<compile_context>
chip_gen: v7x
topology: tpu7x:2x2x1
jax: 0.10.0
libtpu: 0.0.40
codegen_flags: <defaults>
</compile_context>

<pallas_src>
import math
import jax
import jax.numpy as jnp
from jax.experimental import pallas as pl
from jax.experimental.pallas import tpu as pltpu

# ---- small, BERT-shaped config (scaled down) ----
BATCH = 2
SEQ = 8
HIDDEN = 32
NUM_HEADS = 4
HEAD_DIM = HIDDEN // NUM_HEADS
INTER = 64
LN_EPS = 1e-5

# packed-parameter slab layout: one (8, 128) f32 tile holds every small vector param
PSLAB_ROWS = 8
PSLAB_COLS = 128
R_LN1G, R_LN1B, R_LN2G, R_LN2B, R_BO, R_B2, R_BQKV, R_B1 = range(8)


def _layer_norm(x, gamma, beta):
    # x: (N, H); normalize over last dim (matches nn.LayerNorm(hidden_size))
    mean = jnp.mean(x, axis=-1, keepdims=True)
    var = jnp.mean((x - mean) ** 2, axis=-1, keepdims=True)
    inv = jax.lax.rsqrt(var + LN_EPS)
    return (x - mean) * inv * gamma + beta


def encoder_layer_kernel(x_ref, pslab_ref, wqkv_ref, wo_ref, w1_ref, w2_ref, o_ref):
    x = x_ref[...]                                   # (B*S, H)
    p = pslab_ref[...]                               # (8, 128) packed small params

    ln1g = p[R_LN1G:R_LN1G + 1, :HIDDEN]             # (1, H)
    ln1b = p[R_LN1B:R_LN1B + 1, :HIDDEN]
    ln2g = p[R_LN2G:R_LN2G + 1, :HIDDEN]
    ln2b = p[R_LN2B:R_LN2B + 1, :HIDDEN]
    bo   = p[R_BO:R_BO + 1, :HIDDEN]
    b2   = p[R_B2:R_B2 + 1, :HIDDEN]
    bqkv = p[R_BQKV:R_BQKV + 1, :3 * HIDDEN]         # (1, 3H)
    b1   = p[R_B1:R_B1 + 1, :INTER]                  # (1, INTER)

    # ---- LayerNorm 1 ----
    h = _layer_norm(x, ln1g, ln1b)                   # (B*S, H)

    # ---- fused QKV projection: one MXU push instead of 3*NUM_HEADS tiny ones ----
    qkv = jnp.dot(h, wqkv_ref[...], preferred_element_type=jnp.float32) + bqkv
    q = qkv[:, 0 * HIDDEN:1 * HIDDEN]                # scale folded into Wq/bq
    k = qkv[:, 1 * HIDDEN:2 * HIDDEN]
    v = qkv[:, 2 * HIDDEN:3 * HIDDEN]

    # ---- attention: per-head, batched over B via einsum; concat folded into Wo ----
    attn = bo                                        # (1, H), broadcasts on first add
    for hd in range(NUM_HEADS):                      # static loop over small head count
        lo = hd * HEAD_DIM
        hi = lo + HEAD_DIM
        qh = q[:, lo:hi].reshape(BATCH, SEQ, HEAD_DIM)
        kh = k[:, lo:hi].reshape(BATCH, SEQ, HEAD_DIM)
        vh = v[:, lo:hi].reshape(BATCH, SEQ, HEAD_DIM)
        s = jnp.einsum('bqd,bkd->bqk', qh, kh,
                       preferred_element_type=jnp.float32)      # no k.T transpose
        s = s - jnp.max(s, axis=-1, keepdims=True)
        e = jnp.exp(s)
        w = e / jnp.sum(e, axis=-1, keepdims=True)               # exact divide
        ctx = jnp.einsum('bqk,bkd->bqd', w, vh,
                         preferred_element_type=jnp.float32)
        ctx = ctx.reshape(BATCH * SEQ, HEAD_DIM)
        # accumulate this head's slice of the output projection (no lane concat)
        attn = attn + jnp.dot(ctx, wo_ref[lo:hi, :],
                              preferred_element_type=jnp.float32)

    # ---- first residual ----
    x1 = x + attn

    # ---- LayerNorm 2 + FeedForward (exact erf GELU) ----
    h2 = _layer_norm(x1, ln2g, ln2b)
    ff = jnp.dot(h2, w1_ref[...], preferred_element_type=jnp.float32) + b1
    ff = 0.5 * ff * (1.0 + jax.lax.erf(ff * (1.0 / math.sqrt(2.0))))
    ff = jnp.dot(ff, w2_ref[...], preferred_element_type=jnp.float32) + b2
    # Dropout is identity (inference semantics).

    # ---- second residual ----
    o_ref[...] = x1 + ff


def _prepare_inputs(x, params):
    """Wrapper-side packing: fuse QKV weights, fold scale, pack small params."""
    (ln1g, ln1b, wq, bq, wk, bk, wv, bv, wo, bo,
     ln2g, ln2b, w1, b1, w2, b2) = params
    B, S, H = x.shape
    scale = 1.0 / math.sqrt(HEAD_DIM)

    # per-head (NH, H, D) -> (H, NH*D) with column order matching the torch concat
    wq_m = jnp.transpose(wq, (1, 0, 2)).reshape(H, H) * scale   # fold 1/sqrt(D)
    wk_m = jnp.transpose(wk, (1, 0, 2)).reshape(H, H)
    wv_m = jnp.transpose(wv, (1, 0, 2)).reshape(H, H)
    w_qkv = jnp.concatenate([wq_m, wk_m, wv_m], axis=1)          # (H, 3H)
    b_qkv = jnp.concatenate(
        [bq.reshape(-1) * scale, bk.reshape(-1), bv.reshape(-1)])  # (3H,)

    slab = jnp.zeros((PSLAB_ROWS, PSLAB_COLS), jnp.float32)
    slab = slab.at[R_LN1G, :H].set(ln1g)
    slab = slab.at[R_LN1B, :H].set(ln1b)
    slab = slab.at[R_LN2G, :H].set(ln2g)
    slab = slab.at[R_LN2B, :H].set(ln2b)
    slab = slab.at[R_BO, :H].set(bo)
    slab = slab.at[R_B2, :H].set(b2)
    slab = slab.at[R_BQKV, :3 * H].set(b_qkv)
    slab = slab.at[R_B1, :INTER].set(b1)

    x2 = x.reshape(B * S, H)
    return x2, slab, w_qkv, wo, w1, w2


def transformer_encoder_layer(x, params):
    B, S, H = x.shape
    x2, slab, w_qkv, wo, w1, w2 = _prepare_inputs(x, params)

    full = lambda shape: pl.BlockSpec(shape, lambda i: tuple(0 for _ in shape))

    out2 = pl.pallas_call(
        encoder_layer_kernel,
        out_shape=jax.ShapeDtypeStruct((B * S, H), x.dtype),
        grid_spec=pltpu.PrefetchScalarGridSpec(
            num_scalar_prefetch=0,
            grid=(1,),                               # whole batch in one invocation
            in_specs=[
                full((B * S, H)),                    # x slab
                full((PSLAB_ROWS, PSLAB_COLS)),      # packed small params
                full((H, 3 * H)),                    # fused W_qkv
                full((H, H)),                        # Wo
                full((H, INTER)),                    # W1
                full((INTER, H)),                    # W2
            ],
            out_specs=full((B * S, H)),
        ),
        compiler_params=pltpu.CompilerParams(
            dimension_semantics=("arbitrary",)),
    )(x2, slab, w_qkv, wo, w1, w2)
    return out2.reshape(B, S, H)


# ---------------- pure-JAX reference (for sanity check) ----------------
def reference(x, params):
    (ln1g, ln1b, wq, bq, wk, bk, wv, bv, wo, bo,
     ln2g, ln2b, w1, b1, w2, b2) = params

    def ln(v, g, b):
        m = jnp.mean(v, -1, keepdims=True)
        var = jnp.mean((v - m) ** 2, -1, keepdims=True)
        return (v - m) / jnp.sqrt(var + LN_EPS) * g + b

    h = ln(x, ln1g, ln1b)                                   # (B,S,H)
    outs = []
    for i in range(NUM_HEADS):
        q = h @ wq[i] + bq[i]
        k = h @ wk[i] + bk[i]
        v = h @ wv[i] + bv[i]
        s = jnp.einsum('bqd,bkd->bqk', q, k) / math.sqrt(HEAD_DIM)
        w = jax.nn.softmax(s, axis=-1)
        outs.append(jnp.einsum('bqk,bkd->bqd', w, v))
    attn = jnp.concatenate(outs, -1) @ wo + bo
    x = x + attn
    h2 = ln(x, ln2g, ln2b)
    ff = jax.nn.gelu(h2 @ w1 + b1, approximate=False) @ w2 + b2
    return x + ff


def make_params(key):
    ks = jax.random.split(key, 12)
    s = 0.05
    ln1g = jnp.ones((HIDDEN,), jnp.float32)
    ln1b = jnp.zeros((HIDDEN,), jnp.float32)
    ln2g = jnp.ones((HIDDEN,), jnp.float32)
    ln2b = jnp.zeros((HIDDEN,), jnp.float32)
    wq = s * jax.random.normal(ks[0], (NUM_HEADS, HIDDEN, HEAD_DIM), jnp.float32)
    bq = s * jax.random.normal(ks[1], (NUM_HEADS, HEAD_DIM), jnp.float32)
    wk = s * jax.random.normal(ks[2], (NUM_HEADS, HIDDEN, HEAD_DIM), jnp.float32)
    bk = s * jax.random.normal(ks[3], (NUM_HEADS, HEAD_DIM), jnp.float32)
    wv = s * jax.random.normal(ks[4], (NUM_HEADS, HIDDEN, HEAD_DIM), jnp.float32)
    bv = s * jax.random.normal(ks[5], (NUM_HEADS, HEAD_DIM), jnp.float32)
    wo = s * jax.random.normal(ks[6], (HIDDEN, HIDDEN), jnp.float32)
    bo = s * jax.random.normal(ks[7], (HIDDEN,), jnp.float32)
    w1 = s * jax.random.normal(ks[8], (HIDDEN, INTER), jnp.float32)
    b1 = s * jax.random.normal(ks[9], (INTER,), jnp.float32)
    w2 = s * jax.random.normal(ks[10], (INTER, HIDDEN), jnp.float32)
    b2 = s * jax.random.normal(ks[11], (HIDDEN,), jnp.float32)
    return (ln1g, ln1b, wq, bq, wk, bk, wv, bv, wo, bo,
            ln2g, ln2b, w1, b1, w2, b2)


if __name__ == "__main__":
    key = jax.random.PRNGKey(0)
    kx, kp = jax.random.split(key)
    x = jax.random.normal(kx, (BATCH, SEQ, HIDDEN), jnp.float32)
    params = make_params(kp)

    out = transformer_encoder_layer(x, params)
    out = jax.block_until_ready(out)

    ref = reference(x, params)
    assert out.shape == (BATCH, SEQ, HIDDEN)
    assert jnp.allclose(out, ref, atol=1e-4, rtol=1e-4), "mismatch vs reference"
    print("KERNEL_OK")
</pallas_src>

<mosaic_0001>
module attributes {stable_mosaic.version = 11 : i64} {
  func.func @encoder_layer_kernel(%arg0: i32, %arg1: memref<16x32xf32, #tpu.memory_space<vmem>>, %arg2: memref<8x128xf32, #tpu.memory_space<vmem>>, %arg3: memref<32x96xf32, #tpu.memory_space<vmem>>, %arg4: memref<32x32xf32, #tpu.memory_space<vmem>>, %arg5: memref<32x64xf32, #tpu.memory_space<vmem>>, %arg6: memref<64x32xf32, #tpu.memory_space<vmem>>, %arg7: memref<16x32xf32, #tpu.memory_space<vmem>>) attributes {dimension_semantics = [#tpu.dimension_semantics<arbitrary>], iteration_bounds = array<i64: 1>, scalar_prefetch = 0 : i64, scratch_operands = 0 : i64, tpu.core_type = #tpu.core_type<tc>, window_params = [{pipeline_mode = #tpu.pipeline_mode<synchronous>, transform_indices = @transform_0, window_bounds = array<i64: 16, 32>}, {pipeline_mode = #tpu.pipeline_mode<synchronous>, transform_indices = @transform_1, window_bounds = array<i64: 8, 128>}, {pipeline_mode = #tpu.pipeline_mode<synchronous>, transform_indices = @transform_2, window_bounds = array<i64: 32, 96>}, {pipeline_mode = #tpu.pipeline_mode<synchronous>, transform_indices = @transform_3, window_bounds = array<i64: 32, 32>}, {pipeline_mode = #tpu.pipeline_mode<synchronous>, transform_indices = @transform_4, window_bounds = array<i64: 32, 64>}, {pipeline_mode = #tpu.pipeline_mode<synchronous>, transform_indices = @transform_5, window_bounds = array<i64: 64, 32>}, {pipeline_mode = #tpu.pipeline_mode<synchronous>, transform_indices = @transform_6, window_bounds = array<i64: 16, 32>}]} {
    %c0 = arith.constant 0 : index
    %c0_0 = arith.constant 0 : index
    %0 = vector.load %arg1[%c0, %c0_0] : memref<16x32xf32, #tpu.memory_space<vmem>>, vector<16x32xf32>
    %c0_1 = arith.constant 0 : index
    %c0_2 = arith.constant 0 : index
    %1 = vector.load %arg2[%c0_1, %c0_2] : memref<8x128xf32, #tpu.memory_space<vmem>>, vector<8x128xf32>
    %2 = vector.extract_strided_slice %1 {offsets = [0, 0], sizes = [1, 32], strides = [1, 1]} : vector<8x128xf32> to vector<1x32xf32>
    %3 = vector.extract_strided_slice %1 {offsets = [1, 0], sizes = [1, 32], strides = [1, 1]} : vector<8x128xf32> to vector<1x32xf32>
    %4 = vector.extract_strided_slice %1 {offsets = [2, 0], sizes = [1, 32], strides = [1, 1]} : vector<8x128xf32> to vector<1x32xf32>
    %5 = vector.extract_strided_slice %1 {offsets = [3, 0], sizes = [1, 32], strides = [1, 1]} : vector<8x128xf32> to vector<1x32xf32>
    %6 = vector.extract_strided_slice %1 {offsets = [4, 0], sizes = [1, 32], strides = [1, 1]} : vector<8x128xf32> to vector<1x32xf32>
    %7 = vector.extract_strided_slice %1 {offsets = [5, 0], sizes = [1, 32], strides = [1, 1]} : vector<8x128xf32> to vector<1x32xf32>
    %8 = vector.extract_strided_slice %1 {offsets = [6, 0], sizes = [1, 96], strides = [1, 1]} : vector<8x128xf32> to vector<1x96xf32>
    %9 = vector.extract_strided_slice %1 {offsets = [7, 0], sizes = [1, 64], strides = [1, 1]} : vector<8x128xf32> to vector<1x64xf32>
    %cst = arith.constant dense<0.000000e+00> : vector<16xf32>
    %10 = vector.multi_reduction <add>, %0, %cst [1] : vector<16x32xf32> to vector<16xf32>
    %11 = vector.shape_cast %10 : vector<16xf32> to vector<16x1xf32>
    %cst_3 = arith.constant 3.200000e+01 : f32
    %12 = vector.broadcast %cst_3 : f32 to vector<16x1xf32>
    %13 = arith.divf %11, %12 : vector<16x1xf32>
    %14 = vector.broadcast %13 : vector<16x1xf32> to vector<16x32xf32>
    %15 = arith.subf %0, %14 : vector<16x32xf32>
    %16 = arith.mulf %15, %15 : vector<16x32xf32>
    %cst_4 = arith.constant dense<0.000000e+00> : vector<16xf32>
    %17 = vector.multi_reduction <add>, %16, %cst_4 [1] : vector<16x32xf32> to vector<16xf32>
    %18 = vector.shape_cast %17 : vector<16xf32> to vector<16x1xf32>
    %cst_5 = arith.constant 3.200000e+01 : f32
    %19 = vector.broadcast %cst_5 : f32 to vector<16x1xf32>
    %20 = arith.divf %18, %19 : vector<16x1xf32>
    %cst_6 = arith.constant 9.99999974E-6 : f32
    %21 = vector.broadcast %cst_6 : f32 to vector<16x1xf32>
    %22 = arith.addf %20, %21 : vector<16x1xf32>
    %23 = math.rsqrt %22 : vector<16x1xf32>
    %24 = vector.broadcast %13 : vector<16x1xf32> to vector<16x32xf32>
    %25 = arith.subf %0, %24 : vector<16x32xf32>
    %26 = vector.broadcast %23 : vector<16x1xf32> to vector<16x32xf32>
    %27 = arith.mulf %25, %26 : vector<16x32xf32>
    %28 = vector.broadcast %2 : vector<1x32xf32> to vector<16x32xf32>
    %29 = arith.mulf %27, %28 : vector<16x32xf32>
    %30 = vector.broadcast %3 : vector<1x32xf32> to vector<16x32xf32>
    %31 = arith.addf %29, %30 : vector<16x32xf32>
    %c0_7 = arith.constant 0 : index
    %c0_8 = arith.constant 0 : index
    %32 = vector.load %arg3[%c0_7, %c0_8] : memref<32x96xf32, #tpu.memory_space<vmem>>, vector<32x96xf32>
    %cst_9 = arith.constant dense<0.000000e+00> : vector<16x96xf32>
    %33 = tpu.matmul %31, %32, %cst_9 {dimension_numbers = #tpu.dot_dimension_numbers<[1], [0], [0], [1], [0, 0, 1, 1], [], []>} : vector<16x32xf32>, vector<32x96xf32>, vector<16x96xf32> -> vector<16x96xf32>
    %34 = vector.broadcast %8 : vector<1x96xf32> to vector<16x96xf32>
    %35 = arith.addf %33, %34 : vector<16x96xf32>
    %36 = vector.extract_strided_slice %35 {offsets = [0, 0], sizes = [16, 32], strides = [1, 1]} : vector<16x96xf32> to vector<16x32xf32>
    %37 = vector.extract_strided_slice %35 {offsets = [0, 32], sizes = [16, 32], strides = [1, 1]} : vector<16x96xf32> to vector<16x32xf32>
    %38 = vector.extract_strided_slice %35 {offsets = [0, 64], sizes = [16, 32], strides = [1, 1]} : vector<16x96xf32> to vector<16x32xf32>
    %39 = vector.extract_strided_slice %36 {offsets = [0, 0], sizes = [16, 8], strides = [1, 1]} : vector<16x32xf32> to vector<16x8xf32>
    %40 = vector.shape_cast %39 : vector<16x8xf32> to vector<2x8x8xf32>
    %41 = vector.extract_strided_slice %37 {offsets = [0, 0], sizes = [16, 8], strides = [1, 1]} : vector<16x32xf32> to vector<16x8xf32>
    %42 = vector.shape_cast %41 : vector<16x8xf32> to vector<2x8x8xf32>
    %43 = vector.extract_strided_slice %38 {offsets = [0, 0], sizes = [16, 8], strides = [1, 1]} : vector<16x32xf32> to vector<16x8xf32>
    %44 = vector.shape_cast %43 : vector<16x8xf32> to vector<2x8x8xf32>
    "tpu.trace_start"() <{level = 10 : i32, message = "bqd,bkd->bqk"}> : () -> ()
    %cst_10 = arith.constant dense<0.000000e+00> : vector<2x8x8xf32>
    %45 = tpu.matmul %40, %42, %cst_10 {dimension_numbers = #tpu.dot_dimension_numbers<[2], [2], [1], [1], [0, 0, 0, 1, 1, 1], [0], [0]>} : vector<2x8x8xf32>, vector<2x8x8xf32>, vector<2x8x8xf32> -> vector<2x8x8xf32>
    "tpu.trace_stop"() : () -> ()
    %cst_11 = arith.constant dense<0xFF800000> : vector<2x8xf32>
    %46 = vector.multi_reduction <maximumf>, %45, %cst_11 [2] : vector<2x8x8xf32> to vector<2x8xf32>
    %47 = vector.shape_cast %46 : vector<2x8xf32> to vector<2x8x1xf32>
    %48 = vector.broadcast %47 : vector<2x8x1xf32> to vector<2x8x8xf32>
    %49 = arith.subf %45, %48 : vector<2x8x8xf32>
    %50 = math.exp %49 : vector<2x8x8xf32>
    %cst_12 = arith.constant dense<0.000000e+00> : vector<2x8xf32>
    %51 = vector.multi_reduction <add>, %50, %cst_12 [2] : vector<2x8x8xf32> to vector<2x8xf32>
    %52 = vector.shape_cast %51 : vector<2x8xf32> to vector<2x8x1xf32>
    %53 = vector.broadcast %52 : vector<2x8x1xf32> to vector<2x8x8xf32>
    %54 = arith.divf %50, %53 : vector<2x8x8xf32>
    "tpu.trace_start"() <{level = 10 : i32, message = "bqk,bkd->bqd"}> : () -> ()
    %cst_13 = arith.constant dense<0.000000e+00> : vector<2x8x8xf32>
    %55 = tpu.matmul %54, %44, %cst_13 {dimension_numbers = #tpu.dot_dimension_numbers<[2], [1], [1], [2], [0, 0, 0, 1, 1, 2], [0], [0]>} : vector<2x8x8xf32>, vector<2x8x8xf32>, vector<2x8x8xf32> -> vector<2x8x8xf32>
    "tpu.trace_stop"() : () -> ()
    %56 = vector.shape_cast %55 : vector<2x8x8xf32> to vector<16x8xf32>
    %c0_14 = arith.constant 0 : index
    %c0_15 = arith.constant 0 : index
    %57 = vector.load %arg4[%c0_14, %c0_15] : memref<32x32xf32, #tpu.memory_space<vmem>>, vector<8x32xf32>
    %cst_16 = arith.constant dense<0.000000e+00> : vector<16x32xf32>
    %58 = tpu.matmul %56, %57, %cst_16 {dimension_numbers = #tpu.dot_dimension_numbers<[1], [0], [0], [1], [0, 0, 1, 1], [], []>} : vector<16x8xf32>, vector<8x32xf32>, vector<16x32xf32> -> vector<16x32xf32>
    %59 = vector.broadcast %6 : vector<1x32xf32> to vector<16x32xf32>
    %60 = arith.addf %59, %58 : vector<16x32xf32>
    %61 = vector.extract_strided_slice %36 {offsets = [0, 8], sizes = [16, 8], strides = [1, 1]} : vector<16x32xf32> to vector<16x8xf32>
    %62 = vector.shape_cast %61 : vector<16x8xf32> to vector<2x8x8xf32>
    %63 = vector.extract_strided_slice %37 {offsets = [0, 8], sizes = [16, 8], strides = [1, 1]} : vector<16x32xf32> to vector<16x8xf32>
    %64 = vector.shape_cast %63 : vector<16x8xf32> to vector<2x8x8xf32>
    %65 = vector.extract_strided_slice %38 {offsets = [0, 8], sizes = [16, 8], strides = [1, 1]} : vector<16x32xf32> to vector<16x8xf32>
    %66 = vector.shape_cast %65 : vector<16x8xf32> to vector<2x8x8xf32>
    "tpu.trace_start"() <{level = 10 : i32, message = "bqd,bkd->bqk"}> : () -> ()
    %cst_17 = arith.constant dense<0.000000e+00> : vector<2x8x8xf32>
    %67 = tpu.matmul %62, %64, %cst_17 {dimension_numbers = #tpu.dot_dimension_numbers<[2], [2], [1], [1], [0, 0, 0, 1, 1, 1], [0], [0]>} : vector<2x8x8xf32>, vector<2x8x8xf32>, vector<2x8x8xf32> -> vector<2x8x8xf32>
    "tpu.trace_stop"() : () -> ()
    %cst_18 = arith.constant dense<0xFF800000> : vector<2x8xf32>
    %68 = vector.multi_reduction <maximumf>, %67, %cst_18 [2] : vector<2x8x8xf32> to vector<2x8xf32>
    %69 = vector.shape_cast %68 : vector<2x8xf32> to vector<2x8x1xf32>
    %70 = vector.broadcast %69 : vector<2x8x1xf32> to vector<2x8x8xf32>
    %71 = arith.subf %67, %70 : vector<2x8x8xf32>
    %72 = math.exp %71 : vector<2x8x8xf32>
    %cst_19 = arith.constant dense<0.000000e+00> : vector<2x8xf32>
    %73 = vector.multi_reduction <add>, %72, %cst_19 [2] : vector<2x8x8xf32> to vector<2x8xf32>
    %74 = vector.shape_cast %73 : vector<2x8xf32> to vector<2x8x1xf32>
    %75 = vector.broadcast %74 : vector<2x8x1xf32> to vector<2x8x8xf32>
    %76 = arith.divf %72, %75 : vector<2x8x8xf32>
    "tpu.trace_start"() <{level = 10 : i32, message = "bqk,bkd->bqd"}> : () -> ()
    %cst_20 = arith.constant dense<0.000000e+00> : vector<2x8x8xf32>
    %77 = tpu.matmul %76, %66, %cst_20 {dimension_numbers = #tpu.dot_dimension_numbers<[2], [1], [1], [2], [0, 0, 0, 1, 1, 2], [0], [0]>} : vector<2x8x8xf32>, vector<2x8x8xf32>, vector<2x8x8xf32> -> vector<2x8x8xf32>
    "tpu.trace_stop"() : () -> ()
    %78 = vector.shape_cast %77 : vector<2x8x8xf32> to vector<16x8xf32>
    %c8 = arith.constant 8 : index
    %c0_21 = arith.constant 0 : index
    %79 = vector.load %arg4[%c8, %c0_21] : memref<32x32xf32, #tpu.memory_space<vmem>>, vector<8x32xf32>
    %cst_22 = arith.constant dense<0.000000e+00> : vector<16x32xf32>
    %80 = tpu.matmul %78, %79, %cst_22 {dimension_numbers = #tpu.dot_dimension_numbers<[1], [0], [0], [1], [0, 0, 1, 1], [], []>} : vector<16x8xf32>, vector<8x32xf32>, vector<16x32xf32> -> vector<16x32xf32>
    %81 = arith.addf %60, %80 : vector<16x32xf32>
    %82 = vector.extract_strided_slice %36 {offsets = [0, 16], sizes = [16, 8], strides = [1, 1]} : vector<16x32xf32> to vector<16x8xf32>
    %83 = vector.shape_cast %82 : vector<16x8xf32> to vector<2x8x8xf32>
    %84 = vector.extract_strided_slice %37 {offsets = [0, 16], sizes = [16, 8], strides = [1, 1]} : vector<16x32xf32> to vector<16x8xf32>
    %85 = vector.shape_cast %84 : vector<16x8xf32> to vector<2x8x8xf32>
    %86 = vector.extract_strided_slice %38 {offsets = [0, 16], sizes = [16, 8], strides = [1, 1]} : vector<16x32xf32> to vector<16x8xf32>
    %87 = vector.shape_cast %86 : vector<16x8xf32> to vector<2x8x8xf32>
    "tpu.trace_start"() <{level = 10 : i32, message = "bqd,bkd->bqk"}> : () -> ()
    %cst_23 = arith.constant dense<0.000000e+00> : vector<2x8x8xf32>
    %88 = tpu.matmul %83, %85, %cst_23 {dimension_numbers = #tpu.dot_dimension_numbers<[2], [2], [1], [1], [0, 0, 0, 1, 1, 1], [0], [0]>} : vector<2x8x8xf32>, vector<2x8x8xf32>, vector<2x8x8xf32> -> vector<2x8x8xf32>
    "tpu.trace_stop"() : () -> ()
    %cst_24 = arith.constant dense<0xFF800000> : vector<2x8xf32>
    %89 = vector.multi_reduction <maximumf>, %88, %cst_24 [2] : vector<2x8x8xf32> to vector<2x8xf32>
    %90 = vector.shape_cast %89 : vector<2x8xf32> to vector<2x8x1xf32>
    %91 = vector.broadcast %90 : vector<2x8x1xf32> to vector<2x8x8xf32>
    %92 = arith.subf %88, %91 : vector<2x8x8xf32>
    %93 = math.exp %92 : vector<2x8x8xf32>
    %cst_25 = arith.constant dense<0.000000e+00> : vector<2x8xf32>
    %94 = vector.multi_reduction <add>, %93, %cst_25 [2] : vector<2x8x8xf32> to vector<2x8xf32>
    %95 = vector.shape_cast %94 : vector<2x8xf32> to vector<2x8x1xf32>
    %96 = vector.broadcast %95 : vector<2x8x1xf32> to vector<2x8x8xf32>
    %97 = arith.divf %93, %96 : vector<2x8x8xf32>
    "tpu.trace_start"() <{level = 10 : i32, message = "bqk,bkd->bqd"}> : () -> ()
    %cst_26 = arith.constant dense<0.000000e+00> : vector<2x8x8xf32>
    %98 = tpu.matmul %97, %87, %cst_26 {dimension_numbers = #tpu.dot_dimension_numbers<[2], [1], [1], [2], [0, 0, 0, 1, 1, 2], [0], [0]>} : vector<2x8x8xf32>, vector<2x8x8xf32>, vector<2x8x8xf32> -> vector<2x8x8xf32>
    "tpu.trace_stop"() : () -> ()
    %99 = vector.shape_cast %98 : vector<2x8x8xf32> to vector<16x8xf32>
    %c16 = arith.constant 16 : index
    %c0_27 = arith.constant 0 : index
    %100 = vector.load %arg4[%c16, %c0_27] : memref<32x32xf32, #tpu.memory_space<vmem>>, vector<8x32xf32>
    %cst_28 = arith.constant dense<0.000000e+00> : vector<16x32xf32>
    %101 = tpu.matmul %99, %100, %cst_28 {dimension_numbers = #tpu.dot_dimension_numbers<[1], [0], [0], [1], [0, 0, 1, 1], [], []>} : vector<16x8xf32>, vector<8x32xf32>, vector<16x32xf32> -> vector<16x32xf32>
    %102 = arith.addf %81, %101 : vector<16x32xf32>
    %103 = vector.extract_strided_slice %36 {offsets = [0, 24], sizes = [16, 8], strides = [1, 1]} : vector<16x32xf32> to vector<16x8xf32>
    %104 = vector.shape_cast %103 : vector<16x8xf32> to vector<2x8x8xf32>
    %105 = vector.extract_strided_slice %37 {offsets = [0, 24], sizes = [16, 8], strides = [1, 1]} : vector<16x32xf32> to vector<16x8xf32>
    %106 = vector.shape_cast %105 : vector<16x8xf32> to vector<2x8x8xf32>
    %107 = vector.extract_strided_slice %38 {offsets = [0, 24], sizes = [16, 8], strides = [1, 1]} : vector<16x32xf32> to vector<16x8xf32>
    %108 = vector.shape_cast %107 : vector<16x8xf32> to vector<2x8x8xf32>
    "tpu.trace_start"() <{level = 10 : i32, message = "bqd,bkd->bqk"}> : () -> ()
    %cst_29 = arith.constant dense<0.000000e+00> : vector<2x8x8xf32>
    %109 = tpu.matmul %104, %106, %cst_29 {dimension_numbers = #tpu.dot_dimension_numbers<[2], [2], [1], [1], [0, 0, 0, 1, 1, 1], [0], [0]>} : vector<2x8x8xf32>, vector<2x8x8xf32>, vector<2x8x8xf32> -> vector<2x8x8xf32>
    "tpu.trace_stop"() : () -> ()
    %cst_30 = arith.constant dense<0xFF800000> : vector<2x8xf32>
    %110 = vector.multi_reduction <maximumf>, %109, %cst_30 [2] : vector<2x8x8xf32> to vector<2x8xf32>
    %111 = vector.shape_cast %110 : vector<2x8xf32> to vector<2x8x1xf32>
    %112 = vector.broadcast %111 : vector<2x8x1xf32> to vector<2x8x8xf32>
    %113 = arith.subf %109, %112 : vector<2x8x8xf32>
    %114 = math.exp %113 : vector<2x8x8xf32>
    %cst_31 = arith.constant dense<0.000000e+00> : vector<2x8xf32>
    %115 = vector.multi_reduction <add>, %114, %cst_31 [2] : vector<2x8x8xf32> to vector<2x8xf32>
    %116 = vector.shape_cast %115 : vector<2x8xf32> to vector<2x8x1xf32>
    %117 = vector.broadcast %116 : vector<2x8x1xf32> to vector<2x8x8xf32>
    %118 = arith.divf %114, %117 : vector<2x8x8xf32>
    "tpu.trace_start"() <{level = 10 : i32, message = "bqk,bkd->bqd"}> : () -> ()
    %cst_32 = arith.constant dense<0.000000e+00> : vector<2x8x8xf32>
    %119 = tpu.matmul %118, %108, %cst_32 {dimension_numbers = #tpu.dot_dimension_numbers<[2], [1], [1], [2], [0, 0, 0, 1, 1, 2], [0], [0]>} : vector<2x8x8xf32>, vector<2x8x8xf32>, vector<2x8x8xf32> -> vector<2x8x8xf32>
    "tpu.trace_stop"() : () -> ()
    %120 = vector.shape_cast %119 : vector<2x8x8xf32> to vector<16x8xf32>
    %c24 = arith.constant 24 : index
    %c0_33 = arith.constant 0 : index
    %121 = vector.load %arg4[%c24, %c0_33] : memref<32x32xf32, #tpu.memory_space<vmem>>, vector<8x32xf32>
    %cst_34 = arith.constant dense<0.000000e+00> : vector<16x32xf32>
    %122 = tpu.matmul %120, %121, %cst_34 {dimension_numbers = #tpu.dot_dimension_numbers<[1], [0], [0], [1], [0, 0, 1, 1], [], []>} : vector<16x8xf32>, vector<8x32xf32>, vector<16x32xf32> -> vector<16x32xf32>
    %123 = arith.addf %102, %122 : vector<16x32xf32>
    %124 = arith.addf %0, %123 : vector<16x32xf32>
    %cst_35 = arith.constant dense<0.000000e+00> : vector<16xf32>
    %125 = vector.multi_reduction <add>, %124, %cst_35 [1] : vector<16x32xf32> to vector<16xf32>
    %126 = vector.shape_cast %125 : vector<16xf32> to vector<16x1xf32>
    %cst_36 = arith.constant 3.200000e+01 : f32
    %127 = vector.broadcast %cst_36 : f32 to vector<16x1xf32>
    %128 = arith.divf %126, %127 : vector<16x1xf32>
    %129 = vector.broadcast %128 : vector<16x1xf32> to vector<16x32xf32>
    %130 = arith.subf %124, %129 : vector<16x32xf32>
    %131 = arith.mulf %130, %130 : vector<16x32xf32>
    %cst_37 = arith.constant dense<0.000000e+00> : vector<16xf32>
    %132 = vector.multi_reduction <add>, %131, %cst_37 [1] : vector<16x32xf32> to vector<16xf32>
    %133 = vector.shape_cast %132 : vector<16xf32> to vector<16x1xf32>
    %cst_38 = arith.constant 3.200000e+01 : f32
    %134 = vector.broadcast %cst_38 : f32 to vector<16x1xf32>
    %135 = arith.divf %133, %134 : vector<16x1xf32>
    %cst_39 = arith.constant 9.99999974E-6 : f32
    %136 = vector.broadcast %cst_39 : f32 to vector<16x1xf32>
    %137 = arith.addf %135, %136 : vector<16x1xf32>
    %138 = math.rsqrt %137 : vector<16x1xf32>
    %139 = vector.broadcast %128 : vector<16x1xf32> to vector<16x32xf32>
    %140 = arith.subf %124, %139 : vector<16x32xf32>
    %141 = vector.broadcast %138 : vector<16x1xf32> to vector<16x32xf32>
    %142 = arith.mulf %140, %141 : vector<16x32xf32>
    %143 = vector.broadcast %4 : vector<1x32xf32> to vector<16x32xf32>
    %144 = arith.mulf %142, %143 : vector<16x32xf32>
    %145 = vector.broadcast %5 : vector<1x32xf32> to vector<16x32xf32>
    %146 = arith.addf %144, %145 : vector<16x32xf32>
    %c0_40 = arith.constant 0 : index
    %c0_41 = arith.constant 0 : index
    %147 = vector.load %arg5[%c0_40, %c0_41] : memref<32x64xf32, #tpu.memory_space<vmem>>, vector<32x64xf32>
    %cst_42 = arith.constant dense<0.000000e+00> : vector<16x64xf32>
    %148 = tpu.matmul %146, %147, %cst_42 {dimension_numbers = #tpu.dot_dimension_numbers<[1], [0], [0], [1], [0, 0, 1, 1], [], []>} : vector<16x32xf32>, vector<32x64xf32>, vector<16x64xf32> -> vector<16x64xf32>
    %149 = vector.broadcast %9 : vector<1x64xf32> to vector<16x64xf32>
    %150 = arith.addf %148, %149 : vector<16x64xf32>
    %cst_43 = arith.constant 5.000000e-01 : f32
    %151 = vector.broadcast %cst_43 : f32 to vector<16x64xf32>
    %152 = arith.mulf %151, %150 : vector<16x64xf32>
    %cst_44 = arith.constant 0.707106769 : f32
    %153 = vector.broadcast %cst_44 : f32 to vector<16x64xf32>
    %154 = arith.mulf %150, %153 : vector<16x64xf32>
    %155 = math.erf %154 : vector<16x64xf32>
    %cst_45 = arith.constant 1.000000e+00 : f32
    %156 = vector.broadcast %cst_45 : f32 to vector<16x64xf32>
    %157 = arith.addf %156, %155 : vector<16x64xf32>
    %158 = arith.mulf %152, %157 : vector<16x64xf32>
    %c0_46 = arith.constant 0 : index
    %c0_47 = arith.constant 0 : index
    %159 = vector.load %arg6[%c0_46, %c0_47] : memref<64x32xf32, #tpu.memory_space<vmem>>, vector<64x32xf32>
    %cst_48 = arith.constant dense<0.000000e+00> : vector<16x32xf32>
    %160 = tpu.matmul %158, %159, %cst_48 {dimension_numbers = #tpu.dot_dimension_numbers<[1], [0], [0], [1], [0, 0, 1, 1], [], []>} : vector<16x64xf32>, vector<64x32xf32>, vector<16x32xf32> -> vector<16x32xf32>
    %161 = vector.broadcast %7 : vector<1x32xf32> to vector<16x32xf32>
    %162 = arith.addf %160, %161 : vector<16x32xf32>
    %163 = arith.addf %124, %162 : vector<16x32xf32>
    %c0_49 = arith.constant 0 : index
    %c0_50 = arith.constant 0 : index
    %164 = vector.load %arg7[%c0_49, %c0_50] : memref<16x32xf32, #tpu.memory_space<vmem>>, vector<16x32xf32>
    tpu.vector_store %arg7[%c0_49, %c0_50], %163 {strides = array<i32>} : memref<16x32xf32, #tpu.memory_space<vmem>>, vector<16x32xf32>,
    return
  }
  func.func @transform_0(%arg0: i32) -> (i32, i32) {
    %c0_i32 = arith.constant 0 : i32
    %c0_i32_0 = arith.constant 0 : i32
    %c0_i32_1 = arith.constant 0 : i32
    return %c0_i32, %c0_i32_0 : i32, i32
  }
  func.func @transform_1(%arg0: i32) -> (i32, i32) {
    %c0_i32 = arith.constant 0 : i32
    %c0_i32_0 = arith.constant 0 : i32
    %c0_i32_1 = arith.constant 0 : i32
    return %c0_i32, %c0_i32_0 : i32, i32
  }
  func.func @transform_2(%arg0: i32) -> (i32, i32) {
    %c0_i32 = arith.constant 0 : i32
    %c0_i32_0 = arith.constant 0 : i32
    %c0_i32_1 = arith.constant 0 : i32
    return %c0_i32, %c0_i32_0 : i32, i32
  }
  func.func @transform_3(%arg0: i32) -> (i32, i32) {
    %c0_i32 = arith.constant 0 : i32
    %c0_i32_0 = arith.constant 0 : i32
    %c0_i32_1 = arith.constant 0 : i32
    return %c0_i32, %c0_i32_0 : i32, i32
  }
  func.func @transform_4(%arg0: i32) -> (i32, i32) {
    %c0_i32 = arith.constant 0 : i32
    %c0_i32_0 = arith.constant 0 : i32
    %c0_i32_1 = arith.constant 0 : i32
    return %c0_i32, %c0_i32_0 : i32, i32
  }
  func.func @transform_5(%arg0: i32) -> (i32, i32) {
    %c0_i32 = arith.constant 0 : i32
    %c0_i32_0 = arith.constant 0 : i32
    %c0_i32_1 = arith.constant 0 : i32
    return %c0_i32, %c0_i32_0 : i32, i32
  }
  func.func @transform_6(%arg0: i32) -> (i32, i32) {
    %c0_i32 = arith.constant 0 : i32
    %c0_i32_0 = arith.constant 0 : i32
    %c0_i32_1 = arith.constant 0 : i32
    return %c0_i32, %c0_i32_0 : i32, i32
  }
}

</mosaic_0001>

<llo_original>
// kernel: tpu_custom_call.1
$region0: #{tpu_custom_call.1}
  #allocation0 [shape = 'u32[]', space=smem, size = 0x4, offset = 0x4, fixed_abs, tag = 'smem constant byte address 0x4 - core index']
  #allocation1 [shape = 'u32[144,128]{1,0:T(1,128)}', space=vmem, size = 0x12000, scoped, tag = 'internal scratch']
  %s0 = inlined_call_operand.hbm [shape: f32[16,32], index: 0, kind: input, shape index: {}]
  %s1 = inlined_call_operand.hbm [shape: f32[8,128], index: 1, kind: input, shape index: {}]
  %s2 = inlined_call_operand.vmem [shape: f32[32,96], index: 2, kind: input, shape index: {}]
  %s3 = inlined_call_operand.vmem [shape: f32[32,32], index: 3, kind: input, shape index: {}]
  %s4 = inlined_call_operand.vmem [shape: f32[32,64], index: 4, kind: input, shape index: {}]
  %s5 = inlined_call_operand.vmem [shape: f32[64,32], index: 5, kind: input, shape index: {}]
  %s6 = inlined_call_operand.hbm [shape: f32[16,32], index: 6, kind: output, shape index: {}]
  %s7 = sld [smem:[#allocation0]]
  $region42: #{tpu_custom_call.1} parent=0
    _
  %s9 = ssub.s32 1, %s7
  %s10 = scalar_select 0, %s9, %s7
  $region1: #{tpu_custom_call.1} parent=0
    #allocation2 [shape = 'u8[8192]{0}', space=vmem, size = 0x2000, scoped, tag = 'input window, operand 0, single buffered']
    #allocation3 [shape = 's32[1]{0}', space=sflag, size = 0x4, scoped, tag = 'scoped memory for tpu_custom_call.1']
    #allocation4 [shape = 's32[1]{0}', space=sflag, size = 0x4, scoped, tag = 'scoped memory for tpu_custom_call.1']
    #allocation5 [shape = 'u8[4096]{0}', space=vmem, size = 0x1000, scoped, tag = 'input window, operand 1, single buffered']
    #allocation6 [shape = 's32[1]{0}', space=sflag, size = 0x4, scoped, tag = 'scoped memory for tpu_custom_call.1']
    #allocation7 [shape = 'u8[8192]{0}', space=vmem, size = 0x2000, scoped, tag = 'output window, operand 0, single buffered']
    %11 = vsyncpa [#allocation3], 0
    %12 = vsyncpa [#allocation6], 0
    %13 = vsyncpa [#allocation4], 0
    // Predicated region
    $region2: #{tpu_custom_call.1} parent=1 // pred_check
      _
    $region3: #{tpu_custom_call.1} parent=1 // pred_check_branch
      %15 = sbr.rel (0) target = $region5
    $region4: #{tpu_custom_call.1} parent=1 // pred_region
      %s17 = ssub.s32 256, 256
      %18 = vsyncadd [#allocation3], %s17
      %s19 = sshll.u32 [#allocation2], 4
      %s20 = int_to_ptr.vmem [resolvable:$true] %s19
      %25 = dma.hbm_to_vmem [thread:$0]  %s0, 256, %s20, [#allocation3], 128, 128, 8
    $region5: #{tpu_custom_call.1} parent=1 // pred_fallthru
      _
    // Predicated region
    $region6: #{tpu_custom_call.1} parent=1 // pred_check
      _
    $region7: #{tpu_custom_call.1} parent=1 // pred_check_branch
      %27 = sbr.rel (0) target = $region9
    $region8: #{tpu_custom_call.1} parent=1 // pred_region
      %s29 = ssub.s32 128, 128
      %30 = vsyncadd [#allocation6], %s29
      %s32 = sshll.u32 [#allocation5], 4
      %s33 = int_to_ptr.vmem [resolvable:$true] %s32
      %35 = dma.hbm_to_vmem [thread:$0]  %s1, 128, %s33, [#allocation6]
    $region9: #{tpu_custom_call.1} parent=1 // pred_fallthru
      _
    // Predicated region
    $region10: #{tpu_custom_call.1} parent=1 // pred_check
      _
    $region11: #{tpu_custom_call.1} parent=1 // pred_check_branch
      %37 = sbr.rel (0) target = $region13
    $region12: #{tpu_custom_call.1} parent=1 // pred_region
      _
    $region13: #{tpu_custom_call.1} parent=1 // pred_fallthru
      _
    // Predicated region
    $region14: #{tpu_custom_call.1} parent=1 // pred_check
      _
    $region15: #{tpu_custom_call.1} parent=1 // pred_check_branch
      %39 = sbr.rel (0) target = $region17
    $region16: #{tpu_custom_call.1} parent=1 // pred_region
      _
    $region17: #{tpu_custom_call.1} parent=1 // pred_fallthru
      _
    // Predicated region
    $region18: #{tpu_custom_call.1} parent=1 // pred_check
      _
    $region19: #{tpu_custom_call.1} parent=1 // pred_check_branch
      %41 = sbr.rel (0) target = $region21
    $region20: #{tpu_custom_call.1} parent=1 // pred_region
      _
    $region21: #{tpu_custom_call.1} parent=1 // pred_fallthru
      _
    // Predicated region
    $region22: #{tpu_custom_call.1} parent=1 // pred_check
      _
    $region23: #{tpu_custom_call.1} parent=1 // pred_check_branch
      %43 = sbr.rel (0) target = $region25
    $region24: #{tpu_custom_call.1} parent=1 // pred_region
      _
    $region25: #{tpu_custom_call.1} parent=1 // pred_fallthru
      _
    // Predicated region
    $region26: #{tpu_custom_call.1} parent=1 // pred_check
      _
    $region27: #{tpu_custom_call.1} parent=1 // pred_check_branch
      %45 = sbr.rel (0) target = $region29
    $region28: #{tpu_custom_call.1} parent=1 // pred_region
      %46 = dma.done [#allocation3], 256
    $region29: #{tpu_custom_call.1} parent=1 // pred_fallthru
      _
    // Predicated region
    $region30: #{tpu_custom_call.1} parent=1 // pred_check
      _
    $region31: #{tpu_custom_call.1} parent=1 // pred_check_branch
      %48 = sbr.rel (0) target = $region33
    $region32: #{tpu_custom_call.1} parent=1 // pred_region
      %49 = dma.done [#allocation6], 128
    $region33: #{tpu_custom_call.1} parent=1 // pred_fallthru
      _
    %v50 = vld [vmem:[#allocation2] sm:$0xff]
    %v51 = vld [vmem:[#allocation2 + $0x8] sm:$0xff]
    %v52 = vld [vmem:[#allocation5] sm:$0xff]
    %vm53 = vcmask 261120
    %v54 = vsel %vm53, %v50, 0.0
    %55 = vadd.xlane.f32.xlu0 %v54
    %v56 = vpop.xlane.xlu0 %55
    %v57 = vsel %vm53, %v51, 0.0
    %58 = vadd.xlane.f32.xlu0 %v57
    %v59 = vpop.xlane.xlu0 %58
    %v60 = vrcp.pop 32.0
    %v61 = vmul.f32 %v56, %v60
    %v62 = vmul.f32 %v59, %v60
    %v63 = vsub.f32 %v50, %v61
    %v64 = vsub.f32 %v51, %v62
    %v65 = vmul.f32 %v63, %v63
    %v66 = vmul.f32 %v64, %v64
    %v67 = vsel %vm53, %v65, 0.0
    %68 = vadd.xlane.f32.xlu0 %v67
    %v69 = vpop.xlane.xlu0 %68
    %v70 = vsel %vm53, %v66, 0.0
    %71 = vadd.xlane.f32.xlu0 %v70
    %v72 = vpop.xlane.xlu0 %71
    %v73 = vmul.f32 %v69, %v60
    %v74 = vmul.f32 %v72, %v60
    %v75 = vadd.f32 %v73, 1e-05
    %v76 = vadd.f32 %v74, 1e-05
    %v77 = vrsqrt.pop %v75
    %v78 = vrsqrt.pop %v76
    %v79 = vmul.f32 %v63, %v77
    %v80 = vmul.f32 %v64, %v78
    %v81 = vlaneseq
    %v82 = vshrl.u32 %v81, 7
    %v83 = vsub.s32 0, %v82
    %v84 = vrot.slane %v52, %v83
    %v85 = vmul.f32 %v79, %v84
    %v86 = vmul.f32 %v80, %v84
    %v87 = vlaneseq
    %v88 = vshrl.u32 %v87, 7
    %v89 = vsub.s32 1, %v88
    %v90 = vrot.slane %v52, %v89
    %v91 = vadd.f32 %v85, %v90
    %v92 = vadd.f32 %v86, %v90
    %v93 = vld [vmem:[%s2] sm:$0xff]
    %v94 = vld [vmem:[%s2 + $0x8] sm:$0xff]
    %v95 = vld [vmem:[%s2 + $0x10] sm:$0xff]
    %v96 = vld [vmem:[%s2 + $0x18] sm:$0xff]
    %v97 = vlaneseq
    %v98 = vshrl.u32 %v97, 7
    %v99 = vsub.s32 6, %v98
    %v100 = vrot.slane %v52, %v99
    %v102 = vsel %vm53, %v91, 0
    %v105 = vsel %vm53, %v92, 0
    %107 = vmatprep.subr.mxu0 0.0
    %108 = vmatpush1.msra.mxu0 %v93
    %109 = vmatprep.subr.mxu0 0.0
    %110 = vmatpush1.msra.mxu0 %v94
    %111 = vmatprep.subr.mxu0 0.0
    %112 = vmatpush1.msra.mxu0 %v95
    %113 = vmatprep.subr.mxu0 0.0
    %114 = vmatpush1.msra.mxu0 %v96
    %115 = vmatprep.subr.mxu0 0.0
    %116 = vmatpush1.msra.mxu0 0.0
    %117 = vmatprep.subr.mxu0 0.0
    %118 = vmatpush1.msra.mxu0 0.0
    %119 = vmatprep.subr.mxu0 0.0
    %120 = vmatpush1.msra.mxu0 0.0
    %121 = vmatprep.subr.mxu0 0.0
    %122 = vmatpush1.msra.mxu0 0.0
    %123 = vmatprep.subr.mxu0 0.0
    %124 = vmatpush1.msra.mxu0 0.0
    %125 = vmatprep.subr.mxu0 0.0
    %126 = vmatpush1.msra.mxu0 0.0
    %127 = vmatprep.subr.mxu0 0.0
    %128 = vmatpush1.msra.mxu0 0.0
    %129 = vmatprep.subr.mxu0 0.0
    %130 = vmatpush1.msra.mxu0 0.0
    %131 = vmatprep.subr.mxu0 0.0
    %132 = vmatpush1.msra.mxu0 0.0
    %133 = vmatprep.subr.mxu0 0.0
    %134 = vmatpush1.msra.mxu0 0.0
    %135 = vmatprep.subr.mxu0 0.0
    %136 = vmatpush1.msra.mxu0 0.0
    %137 = vmatprep.subr.mxu0 0.0
    %138 = vmatpush1.msra.mxu0 0.0
    %139 = vmatprep.subr.mxu0 0.0
    %140 = vmatpush1.msra.mxu0 0.0
    %141 = vmatprep.subr.mxu0 0.0
    %142 = vmatpush1.msra.mxu0 0.0
    %143 = vmatprep.subr.mxu0 0.0
    %144 = vmatpush1.msra.mxu0 0.0
    %145 = vmatprep.subr.mxu0 0.0
    %146 = vmatpush1.msra.mxu0 0.0
    %147 = vmatprep.subr.mxu0 0.0
    %148 = vmatpush1.msra.mxu0 0.0
    %149 = vmatprep.subr.mxu0 0.0
    %150 = vmatpush1.msra.mxu0 0.0
    %151 = vmatprep.subr.mxu0 0.0
    %152 = vmatpush1.msra.mxu0 0.0
    %153 = vmatprep.subr.mxu0 0.0
    %154 = vmatpush1.msra.mxu0 0.0
    %155 = vmatprep.subr.mxu0 0.0
    %156 = vmatpush1.msra.mxu0 0.0
    %157 = vmatprep.subr.mxu0 0.0
    %158 = vmatpush1.msra.mxu0 0.0
    %159 = vmatprep.subr.mxu0 0.0
    %160 = vmatpush1.msra.mxu0 0.0
    %161 = vmatprep.subr.mxu0 0.0
    %162 = vmatpush1.msra.mxu0 0.0
    %163 = vmatprep.subr.mxu0 0.0
    %164 = vmatpush1.msra.mxu0 0.0
    %165 = vmatprep.subr.mxu0 0.0
    %166 = vmatpush1.msra.mxu0 0.0
    %167 = vmatprep.subr.mxu0 0.0
    %168 = vmatpush1.msra.mxu0 0.0
    %169 = vmatprep.subr.mxu0 0.0
    %170 = vmatpush1.msra.mxu0 0.0
    %171 = vmatprep.mubr.f32.mxu0 0.0
    %172 = vmatmul.mubr.f32.gmra.mrb[0].mxu0 %v102
    %v173 = vpop.f32.mrb[0].mxu0
    %v174 = vadd.f32 %v100, %v173
    %v175 = vpop.f32.mrb[0].mxu0
    %176 = vmatprep.mubr.f32.mxu0 0.0
    %177 = vmatmul.mubr.f32.gmra.mrb[0].mxu0 %v105
    %v178 = vpop.f32.mrb[0].mxu0
    %v179 = vadd.f32 %v100, %v178
    %v180 = vpop.f32.mrb[0].mxu0
    %181 = vdwg.mxu0
    %183 = vrot.lane.b32.xlu0 %v174, 96
    %v184 = vpop.permute.xlu0 %183
    %vm185 = vcmask 64512
    %v186 = vsel %vm185, %v174, 0
    %v188 = vsel %vm185, %v184, 0
    %190 = vmatprep.subr.mxu0 0.0
    %191 = vmatpush1.xpose.msra.mxu0 %v188
    %192 = vmatprep.subr.mxu0 0.0
    %193 = vmatpush1.xpose.msra.mxu0 0.0
    %194 = vmatprep.subr.mxu0 0.0
    %195 = vmatpush1.xpose.msra.mxu0 0.0
    %196 = vmatprep.subr.mxu0 0.0
    %197 = vmatpush1.xpose.msra.mxu0 0.0
    %198 = vmatprep.subr.mxu0 0.0
    %199 = vmatpush1.xpose.msra.mxu0 0.0
    %200 = vmatprep.subr.mxu0 0.0
    %201 = vmatpush1.xpose.msra.mxu0 0.0
    %202 = vmatprep.subr.mxu0 0.0
    %203 = vmatpush1.xpose.msra.mxu0 0.0
    %204 = vmatprep.subr.mxu0 0.0
    %205 = vmatpush1.xpose.msra.mxu0 0.0
    %206 = vmatprep.subr.mxu0 0.0
    %207 = vmatpush1.xpose.msra.mxu0 0.0
    %208 = vmatprep.subr.mxu0 0.0
    %209 = vmatpush1.xpose.msra.mxu0 0.0
    %210 = vmatprep.subr.mxu0 0.0
    %211 = vmatpush1.xpose.msra.mxu0 0.0
    %212 = vmatprep.subr.mxu0 0.0
    %213 = vmatpush1.xpose.msra.mxu0 0.0
    %214 = vmatprep.subr.mxu0 0.0
    %215 = vmatpush1.xpose.msra.mxu0 0.0
    %216 = vmatprep.subr.mxu0 0.0
    %217 = vmatpush1.xpose.msra.mxu0 0.0
    %218 = vmatprep.subr.mxu0 0.0
    %219 = vmatpush1.xpose.msra.mxu0 0.0
    %220 = vmatprep.subr.mxu0 0.0
    %221 = vmatpush1.xpose.msra.mxu0 0.0
    %222 = vmatprep.subr.mxu0 0.0
    %223 = vmatpush1.xpose.msra.mxu0 0.0
    %224 = vmatprep.subr.mxu0 0.0
    %225 = vmatpush1.xpose.msra.mxu0 0.0
    %226 = vmatprep.subr.mxu0 0.0
    %227 = vmatpush1.xpose.msra.mxu0 0.0
    %228 = vmatprep.subr.mxu0 0.0
    %229 = vmatpush1.xpose.msra.mxu0 0.0
    %230 = vmatprep.subr.mxu0 0.0
    %231 = vmatpush1.xpose.msra.mxu0 0.0
    %232 = vmatprep.subr.mxu0 0.0
    %233 = vmatpush1.xpose.msra.mxu0 0.0
    %234 = vmatprep.subr.mxu0 0.0
    %235 = vmatpush1.xpose.msra.mxu0 0.0
    %236 = vmatprep.subr.mxu0 0.0
    %237 = vmatpush1.xpose.msra.mxu0 0.0
    %238 = vmatprep.subr.mxu0 0.0
    %239 = vmatpush1.xpose.msra.mxu0 0.0
    %240 = vmatprep.subr.mxu0 0.0
    %241 = vmatpush1.xpose.msra.mxu0 0.0
    %242 = vmatprep.subr.mxu0 0.0
    %243 = vmatpush1.xpose.msra.mxu0 0.0
    %244 = vmatprep.subr.mxu0 0.0
    %245 = vmatpush1.xpose.msra.mxu0 0.0
    %246 = vmatprep.subr.mxu0 0.0
    %247 = vmatpush1.xpose.msra.mxu0 0.0
    %248 = vmatprep.subr.mxu0 0.0
    %249 = vmatpush1.xpose.msra.mxu0 0.0
    %250 = vmatprep.subr.mxu0 0.0
    %251 = vmatpush1.xpose.msra.mxu0 0.0
    %252 = vmatprep.subr.mxu0 0.0
    %253 = vmatpush1.xpose.msra.mxu0 0.0
    %254 = vmatprep.mubr.f32.mxu0 0.0
    %255 = vmatmul.mubr.f32.gmra.mrb[0].mxu0 %v186
    %v256 = vpop.f32.mrb[0].mxu0
    %v257 = vadd.f32 0.0, %v256
    %v258 = vpop.f32.mrb[0].mxu0
    %259 = vdwg.mxu0
    %261 = vrot.lane.b32.xlu0 %v179, 96
    %v262 = vpop.permute.xlu0 %261
    %v263 = vsel %vm185, %v179, 0
    %v265 = vsel %vm185, %v262, 0
    %267 = vmatprep.subr.mxu0 0.0
    %268 = vmatpush1.xpose.msra.mxu0 %v265
    %269 = vmatprep.subr.mxu0 0.0
    %270 = vmatpush1.xpose.msra.mxu0 0.0
    %271 = vmatprep.subr.mxu0 0.0
    %272 = vmatpush1.xpose.msra.mxu0 0.0
    %273 = vmatprep.subr.mxu0 0.0
    %274 = vmatpush1.xpose.msra.mxu0 0.0
    %275 = vmatprep.subr.mxu0 0.0
    %276 = vmatpush1.xpose.msra.mxu0 0.0
    %277 = vmatprep.subr.mxu0 0.0
    %278 = vmatpush1.xpose.msra.mxu0 0.0
    %279 = vmatprep.subr.mxu0 0.0
    %280 = vmatpush1.xpose.msra.mxu0 0.0
    %281 = vmatprep.subr.mxu0 0.0
    %282 = vmatpush1.xpose.msra.mxu0 0.0
    %283 = vmatprep.subr.mxu0 0.0
    %284 = vmatpush1.xpose.msra.mxu0 0.0
    %285 = vmatprep.subr.mxu0 0.0
    %286 = vmatpush1.xpose.msra.mxu0 0.0
    %287 = vmatprep.subr.mxu0 0.0
    %288 = vmatpush1.xpose.msra.mxu0 0.0
    %289 = vmatprep.subr.mxu0 0.0
    %290 = vmatpush1.xpose.msra.mxu0 0.0
    %291 = vmatprep.subr.mxu0 0.0
    %292 = vmatpush1.xpose.msra.mxu0 0.0
    %293 = vmatprep.subr.mxu0 0.0
    %294 = vmatpush1.xpose.msra.mxu0 0.0
    %295 = vmatprep.subr.mxu0 0.0
    %296 = vmatpush1.xpose.msra.mxu0 0.0
    %297 = vmatprep.subr.mxu0 0.0
    %298 = vmatpush1.xpose.msra.mxu0 0.0
    %299 = vmatprep.subr.mxu0 0.0
    %300 = vmatpush1.xpose.msra.mxu0 0.0
    %301 = vmatprep.subr.mxu0 0.0
    %302 = vmatpush1.xpose.msra.mxu0 0.0
    %303 = vmatprep.subr.mxu0 0.0
    %304 = vmatpush1.xpose.msra.mxu0 0.0
    %305 = vmatprep.subr.mxu0 0.0
    %306 = vmatpush1.xpose.msra.mxu0 0.0
    %307 = vmatprep.subr.mxu0 0.0
    %308 = vmatpush1.xpose.msra.mxu0 0.0
    %309 = vmatprep.subr.mxu0 0.0
    %310 = vmatpush1.xpose.msra.mxu0 0.0
    %311 = vmatprep.subr.mxu0 0.0
    %312 = vmatpush1.xpose.msra.mxu0 0.0
    %313 = vmatprep.subr.mxu0 0.0
    %314 = vmatpush1.xpose.msra.mxu0 0.0
    %315 = vmatprep.subr.mxu0 0.0
    %316 = vmatpush1.xpose.msra.mxu0 0.0
    %317 = vmatprep.subr.mxu0 0.0
    %318 = vmatpush1.xpose.msra.mxu0 0.0
    %319 = vmatprep.subr.mxu0 0.0
    %320 = vmatpush1.xpose.msra.mxu0 0.0
    %321 = vmatprep.subr.mxu0 0.0
    %322 = vmatpush1.xpose.msra.mxu0 0.0
    %323 = vmatprep.subr.mxu0 0.0
    %324 = vmatpush1.xpose.msra.mxu0 0.0
    %325 = vmatprep.subr.mxu0 0.0
    %326 = vmatpush1.xpose.msra.mxu0 0.0
    %327 = vmatprep.subr.mxu0 0.0
    %328 = vmatpush1.xpose.msra.mxu0 0.0
    %329 = vmatprep.subr.mxu0 0.0
    %330 = vmatpush1.xpose.msra.mxu0 0.0
    %331 = vmatprep.mubr.f32.mxu0 0.0
    %332 = vmatmul.mubr.f32.gmra.mrb[0].mxu0 %v263
    %v333 = vpop.f32.mrb[0].mxu0
    %v334 = vadd.f32 0.0, %v333
    %v335 = vpop.f32.mrb[0].mxu0
    %336 = vdwg.mxu0
    %v337 = vsel %vm185, %v257, -inf
    %338 = vmax.xlane.f32.xlu0 %v337
    %v339 = vpop.xlane.xlu0 %338
    %v340 = vsel %vm185, %v334, -inf
    %341 = vmax.xlane.f32.xlu0 %v340
    %v342 = vpop.xlane.xlu0 %341
    %v343 = vsub.f32 %v257, %v339
    %v344 = vsub.f32 %v334, %v342
    %v345 = vmul.f32 %v343, 1.442695
    %v346 = vpow.pop %v345
    %v347 = vmul.f32 %v344, 1.442695
    %v348 = vpow.pop %v347
    %v349 = vsel %vm185, %v346, 0.0
    %350 = vadd.xlane.f32.xlu0 %v349
    %v351 = vpop.xlane.xlu0 %350
    %v352 = vsel %vm185, %v348, 0.0
    %353 = vadd.xlane.f32.xlu0 %v352
    %v354 = vpop.xlane.xlu0 %353
    %v355 = vrcp.pop %v351
    %v356 = vmul.f32 %v346, %v355
    %v357 = vrcp.pop %v354
    %v358 = vmul.f32 %v348, %v357
    %359 = vrot.lane.b32.xlu0 %v174, 64
    %v360 = vpop.permute.xlu0 %359
    %v363 = vsel %vm185, %v356, 0
    %365 = vmatprep.subr.mxu0 0.0
    %366 = vmatpush1.msra.mxu0 %v360
    %367 = vmatprep.subr.mxu0 0.0
    %368 = vmatpush1.msra.mxu0 0.0
    %369 = vmatprep.subr.mxu0 0.0
    %370 = vmatpush1.msra.mxu0 0.0
    %371 = vmatprep.subr.mxu0 0.0
    %372 = vmatpush1.msra.mxu0 0.0
    %373 = vmatprep.subr.mxu0 0.0
    %374 = vmatpush1.msra.mxu0 0.0
    %375 = vmatprep.subr.mxu0 0.0
    %376 = vmatpush1.msra.mxu0 0.0
    %377 = vmatprep.subr.mxu0 0.0
    %378 = vmatpush1.msra.mxu0 0.0
    %379 = vmatprep.subr.mxu0 0.0
    %380 = vmatpush1.msra.mxu0 0.0
    %381 = vmatprep.subr.mxu0 0.0
    %382 = vmatpush1.msra.mxu0 0.0
    %383 = vmatprep.subr.mxu0 0.0
    %384 = vmatpush1.msra.mxu0 0.0
    %385 = vmatprep.subr.mxu0 0.0
    %386 = vmatpush1.msra.mxu0 0.0
    %387 = vmatprep.subr.mxu0 0.0
    %388 = vmatpush1.msra.mxu0 0.0
    %389 = vmatprep.subr.mxu0 0.0
    %390 = vmatpush1.msra.mxu0 0.0
    %391 = vmatprep.subr.mxu0 0.0
    %392 = vmatpush1.msra.mxu0 0.0
    %393 = vmatprep.subr.mxu0 0.0
    %394 = vmatpush1.msra.mxu0 0.0
    %395 = vmatprep.subr.mxu0 0.0
    %396 = vmatpush1.msra.mxu0 0.0
    %397 = vmatprep.subr.mxu0 0.0
    %398 = vmatpush1.msra.mxu0 0.0
    %399 = vmatprep.subr.mxu0 0.0
    %400 = vmatpush1.msra.mxu0 0.0
    %401 = vmatprep.subr.mxu0 0.0
    %402 = vmatpush1.msra.mxu0 0.0
    %403 = vmatprep.subr.mxu0 0.0
    %404 = vmatpush1.msra.mxu0 0.0
    %405 = vmatprep.subr.mxu0 0.0
    %406 = vmatpush1.msra.mxu0 0.0
    %407 = vmatprep.subr.mxu0 0.0
    %408 = vmatpush1.msra.mxu0 0.0
    %409 = vmatprep.subr.mxu0 0.0
    %410 = vmatpush1.msra.mxu0 0.0
    %411 = vmatprep.subr.mxu0 0.0
    %412 = vmatpush1.msra.mxu0 0.0
    %413 = vmatprep.subr.mxu0 0.0
    %414 = vmatpush1.msra.mxu0 0.0
    %415 = vmatprep.subr.mxu0 0.0
    %416 = vmatpush1.msra.mxu0 0.0
    %417 = vmatprep.subr.mxu0 0.0
    %418 = vmatpush1.msra.mxu0 0.0
    %419 = vmatprep.subr.mxu0 0.0
    %420 = vmatpush1.msra.mxu0 0.0
    %421 = vmatprep.subr.mxu0 0.0
    %422 = vmatpush1.msra.mxu0 0.0
    %423 = vmatprep.subr.mxu0 0.0
    %424 = vmatpush1.msra.mxu0 0.0
    %425 = vmatprep.subr.mxu0 0.0
    %426 = vmatpush1.msra.mxu0 0.0
    %427 = vmatprep.subr.mxu0 0.0
    %428 = vmatpush1.msra.mxu0 0.0
    %429 = vmatprep.mubr.f32.mxu0 0.0
    %430 = vmatmul.mubr.f32.gmra.mrb[0].mxu0 %v363
    %v431 = vpop.f32.mrb[0].mxu0
    %v432 = vadd.f32 0.0, %v431
    %v433 = vpop.f32.mrb[0].mxu0
    %434 = vdwg.mxu0
    %435 = vrot.lane.b32.xlu0 %v179, 64
    %v436 = vpop.permute.xlu0 %435
    %v439 = vsel %vm185, %v358, 0
    %441 = vmatprep.subr.mxu0 0.0
    %442 = vmatpush1.msra.mxu0 %v436
    %443 = vmatprep.subr.mxu0 0.0
    %444 = vmatpush1.msra.mxu0 0.0
    %445 = vmatprep.subr.mxu0 0.0
    %446 = vmatpush1.msra.mxu0 0.0
    %447 = vmatprep.subr.mxu0 0.0
    %448 = vmatpush1.msra.mxu0 0.0
    %449 = vmatprep.subr.mxu0 0.0
    %450 = vmatpush1.msra.mxu0 0.0
    %451 = vmatprep.subr.mxu0 0.0
    %452 = vmatpush1.msra.mxu0 0.0
    %453 = vmatprep.subr.mxu0 0.0
    %454 = vmatpush1.msra.mxu0 0.0
    %455 = vmatprep.subr.mxu0 0.0
    %456 = vmatpush1.msra.mxu0 0.0
    %457 = vmatprep.subr.mxu0 0.0
    %458 = vmatpush1.msra.mxu0 0.0
    %459 = vmatprep.subr.mxu0 0.0
    %460 = vmatpush1.msra.mxu0 0.0
    %461 = vmatprep.subr.mxu0 0.0
    %462 = vmatpush1.msra.mxu0 0.0
    %463 = vmatprep.subr.mxu0 0.0
    %464 = vmatpush1.msra.mxu0 0.0
    %465 = vmatprep.subr.mxu0 0.0
    %466 = vmatpush1.msra.mxu0 0.0
    %467 = vmatprep.subr.mxu0 0.0
    %468 = vmatpush1.msra.mxu0 0.0
    %469 = vmatprep.subr.mxu0 0.0
    %470 = vmatpush1.msra.mxu0 0.0
    %471 = vmatprep.subr.mxu0 0.0
    %472 = vmatpush1.msra.mxu0 0.0
    %473 = vmatprep.subr.mxu0 0.0
    %474 = vmatpush1.msra.mxu0 0.0
    %475 = vmatprep.subr.mxu0 0.0
    %476 = vmatpush1.msra.mxu0 0.0
    %477 = vmatprep.subr.mxu0 0.0
    %478 = vmatpush1.msra.mxu0 0.0
    %479 = vmatprep.subr.mxu0 0.0
    %480 = vmatpush1.msra.mxu0 0.0
    %481 = vmatprep.subr.mxu0 0.0
    %482 = vmatpush1.msra.mxu0 0.0
    %483 = vmatprep.subr.mxu0 0.0
    %484 = vmatpush1.msra.mxu0 0.0
    %485 = vmatprep.subr.mxu0 0.0
    %486 = vmatpush1.msra.mxu0 0.0
    %487 = vmatprep.subr.mxu0 0.0
    %488 = vmatpush1.msra.mxu0 0.0
    %489 = vmatprep.subr.mxu0 0.0
    %490 = vmatpush1.msra.mxu0 0.0
    %491 = vmatprep.subr.mxu0 0.0
    %492 = vmatpush1.msra.mxu0 0.0
    %493 = vmatprep.subr.mxu0 0.0
    %494 = vmatpush1.msra.mxu0 0.0
    %495 = vmatprep.subr.mxu0 0.0
    %496 = vmatpush1.msra.mxu0 0.0
    %497 = vmatprep.subr.mxu0 0.0
    %498 = vmatpush1.msra.mxu0 0.0
    %499 = vmatprep.subr.mxu0 0.0
    %500 = vmatpush1.msra.mxu0 0.0
    %501 = vmatprep.subr.mxu0 0.0
    %502 = vmatpush1.msra.mxu0 0.0
    %503 = vmatprep.subr.mxu0 0.0
    %504 = vmatpush1.msra.mxu0 0.0
    %505 = vmatprep.mubr.f32.mxu0 0.0
    %506 = vmatmul.mubr.f32.gmra.mrb[0].mxu0 %v439
    %v507 = vpop.f32.mrb[0].mxu0
    %v508 = vadd.f32 0.0, %v507
    %v509 = vpop.f32.mrb[0].mxu0
    %510 = vdwg.mxu0
    %v511 = vld [vmem:[%s3] sm:$0xff]
    %v513 = vsel %vm185, %v432, 0
    %v516 = vsel %vm185, %v508, 0
    %518 = vmatprep.subr.mxu0 0.0
    %519 = vmatpush1.msra.mxu0 %v511
    %520 = vmatprep.subr.mxu0 0.0
    %521 = vmatpush1.msra.mxu0 0.0
    %522 = vmatprep.subr.mxu0 0.0
    %523 = vmatpush1.msra.mxu0 0.0
    %524 = vmatprep.subr.mxu0 0.0
    %525 = vmatpush1.msra.mxu0 0.0
    %526 = vmatprep.subr.mxu0 0.0
    %527 = vmatpush1.msra.mxu0 0.0
    %528 = vmatprep.subr.mxu0 0.0
    %529 = vmatpush1.msra.mxu0 0.0
    %530 = vmatprep.subr.mxu0 0.0
    %531 = vmatpush1.msra.mxu0 0.0
    %532 = vmatprep.subr.mxu0 0.0
    %533 = vmatpush1.msra.mxu0 0.0
    %534 = vmatprep.subr.mxu0 0.0
    %535 = vmatpush1.msra.mxu0 0.0
    %536 = vmatprep.subr.mxu0 0.0
    %537 = vmatpush1.msra.mxu0 0.0
    %538 = vmatprep.subr.mxu0 0.0
    %539 = vmatpush1.msra.mxu0 0.0
    %540 = vmatprep.subr.mxu0 0.0
    %541 = vmatpush1.msra.mxu0 0.0
    %542 = vmatprep.subr.mxu0 0.0
    %543 = vmatpush1.msra.mxu0 0.0
    %544 = vmatprep.subr.mxu0 0.0
    %545 = vmatpush1.msra.mxu0 0.0
    %546 = vmatprep.subr.mxu0 0.0
    %547 = vmatpush1.msra.mxu0 0.0
    %548 = vmatprep.subr.mxu0 0.0
    %549 = vmatpush1.msra.mxu0 0.0
    %550 = vmatprep.subr.mxu0 0.0
    %551 = vmatpush1.msra.mxu0 0.0
    %552 = vmatprep.subr.mxu0 0.0
    %553 = vmatpush1.msra.mxu0 0.0
    %554 = vmatprep.subr.mxu0 0.0
    %555 = vmatpush1.msra.mxu0 0.0
    %556 = vmatprep.subr.mxu0 0.0
    %557 = vmatpush1.msra.mxu0 0.0
    %558 = vmatprep.subr.mxu0 0.0
    %559 = vmatpush1.msra.mxu0 0.0
    %560 = vmatprep.subr.mxu0 0.0
    %561 = vmatpush1.msra.mxu0 0.0
    %562 = vmatprep.subr.mxu0 0.0
    %563 = vmatpush1.msra.mxu0 0.0
    %564 = vmatprep.subr.mxu0 0.0
    %565 = vmatpush1.msra.mxu0 0.0
    %566 = vmatprep.subr.mxu0 0.0
    %567 = vmatpush1.msra.mxu0 0.0
    %568 = vmatprep.subr.mxu0 0.0
    %569 = vmatpush1.msra.mxu0 0.0
    %570 = vmatprep.subr.mxu0 0.0
    %571 = vmatpush1.msra.mxu0 0.0
    %572 = vmatprep.subr.mxu0 0.0
    %573 = vmatpush1.msra.mxu0 0.0
    %574 = vmatprep.subr.mxu0 0.0
    %575 = vmatpush1.msra.mxu0 0.0
    %576 = vmatprep.subr.mxu0 0.0
    %577 = vmatpush1.msra.mxu0 0.0
    %578 = vmatprep.subr.mxu0 0.0
    %579 = vmatpush1.msra.mxu0 0.0
    %580 = vmatprep.subr.mxu0 0.0
    %581 = vmatpush1.msra.mxu0 0.0
    %582 = vmatprep.mubr.f32.mxu0 0.0
    %583 = vmatmul.mubr.f32.gmra.mrb[0].mxu0 %v513
    %v584 = vpop.f32.mrb[0].mxu0
    %v585 = vadd.f32 0.0, %v584
    %v586 = vpop.f32.mrb[0].mxu0
    %587 = vmatprep.mubr.f32.mxu0 0.0
    %588 = vmatmul.mubr.f32.gmra.mrb[0].mxu0 %v516
    %v589 = vpop.f32.mrb[0].mxu0
    %v590 = vadd.f32 0.0, %v589
    %v591 = vpop.f32.mrb[0].mxu0
    %592 = vdwg.mxu0
    %v593 = vlaneseq
    %v594 = vshrl.u32 %v593, 7
    %v595 = vsub.s32 4, %v594
    %v596 = vrot.slane %v52, %v595
    %v597 = vadd.f32 %v596, %v585
    %v598 = vadd.f32 %v596, %v590
    %599 = vrot.lane.b32.xlu0 %v174, 120
    %v600 = vpop.permute.xlu0 %599
    %601 = vrot.lane.b32.xlu0 %v174, 88
    %v602 = vpop.permute.xlu0 %601
    %v603 = vsel %vm185, %v600, 0
    %v605 = vsel %vm185, %v602, 0
    %607 = vmatprep.subr.mxu0 0.0
    %608 = vmatpush1.xpose.msra.mxu0 %v605
    %609 = vmatprep.subr.mxu0 0.0
    %610 = vmatpush1.xpose.msra.mxu0 0.0
    %611 = vmatprep.subr.mxu0 0.0
    %612 = vmatpush1.xpose.msra.mxu0 0.0
    %613 = vmatprep.subr.mxu0 0.0
    %614 = vmatpush1.xpose.msra.mxu0 0.0
    %615 = vmatprep.subr.mxu0 0.0
    %616 = vmatpush1.xpose.msra.mxu0 0.0
    %617 = vmatprep.subr.mxu0 0.0
    %618 = vmatpush1.xpose.msra.mxu0 0.0
    %619 = vmatprep.subr.mxu0 0.0
    %620 = vmatpush1.xpose.msra.mxu0 0.0
    %621 = vmatprep.subr.mxu0 0.0
    %622 = vmatpush1.xpose.msra.mxu0 0.0
    %623 = vmatprep.subr.mxu0 0.0
    %624 = vmatpush1.xpose.msra.mxu0 0.0
    %625 = vmatprep.subr.mxu0 0.0
    %626 = vmatpush1.xpose.msra.mxu0 0.0
    %627 = vmatprep.subr.mxu0 0.0
    %628 = vmatpush1.xpose.msra.mxu0 0.0
    %629 = vmatprep.subr.mxu0 0.0
    %630 = vmatpush1.xpose.msra.mxu0 0.0
    %631 = vmatprep.subr.mxu0 0.0
    %632 = vmatpush1.xpose.msra.mxu0 0.0
    %633 = vmatprep.subr.mxu0 0.0
    %634 = vmatpush1.xpose.msra.mxu0 0.0
    %635 = vmatprep.subr.mxu0 0.0
    %636 = vmatpush1.xpose.msra.mxu0 0.0
    %637 = vmatprep.subr.mxu0 0.0
    %638 = vmatpush1.xpose.msra.mxu0 0.0
    %639 = vmatprep.subr.mxu0 0.0
    %640 = vmatpush1.xpose.msra.mxu0 0.0
    %641 = vmatprep.subr.mxu0 0.0
    %642 = vmatpush1.xpose.msra.mxu0 0.0
    %643 = vmatprep.subr.mxu0 0.0
    %644 = vmatpush1.xpose.msra.mxu0 0.0
    %645 = vmatprep.subr.mxu0 0.0
    %646 = vmatpush1.xpose.msra.mxu0 0.0
    %647 = vmatprep.subr.mxu0 0.0
    %648 = vmatpush1.xpose.msra.mxu0 0.0
    %649 = vmatprep.subr.mxu0 0.0
    %650 = vmatpush1.xpose.msra.mxu0 0.0
    %651 = vmatprep.subr.mxu0 0.0
    %652 = vmatpush1.xpose.msra.mxu0 0.0
    %653 = vmatprep.subr.mxu0 0.0
    %654 = vmatpush1.xpose.msra.mxu0 0.0
    %655 = vmatprep.subr.mxu0 0.0
    %656 = vmatpush1.xpose.msra.mxu0 0.0
    %657 = vmatprep.subr.mxu0 0.0
    %658 = vmatpush1.xpose.msra.mxu0 0.0
    %659 = vmatprep.subr.mxu0 0.0
    %660 = vmatpush1.xpose.msra.mxu0 0.0
    %661 = vmatprep.subr.mxu0 0.0
    %662 = vmatpush1.xpose.msra.mxu0 0.0
    %663 = vmatprep.subr.mxu0 0.0
    %664 = vmatpush1.xpose.msra.mxu0 0.0
    %665 = vmatprep.subr.mxu0 0.0
    %666 = vmatpush1.xpose.msra.mxu0 0.0
    %667 = vmatprep.subr.mxu0 0.0
    %668 = vmatpush1.xpose.msra.mxu0 0.0
    %669 = vmatprep.subr.mxu0 0.0
    %670 = vmatpush1.xpose.msra.mxu0 0.0
    %671 = vmatprep.mubr.f32.mxu0 0.0
    %672 = vmatmul.mubr.f32.gmra.mrb[0].mxu0 %v603
    %v673 = vpop.f32.mrb[0].mxu0
    %v674 = vadd.f32 0.0, %v673
    %v675 = vpop.f32.mrb[0].mxu0
    %676 = vdwg.mxu0
    %677 = vrot.lane.b32.xlu0 %v179, 120
    %v678 = vpop.permute.xlu0 %677
    %679 = vrot.lane.b32.xlu0 %v179, 88
    %v680 = vpop.permute.xlu0 %679
    %v681 = vsel %vm185, %v678, 0
    %v683 = vsel %vm185, %v680, 0
    %685 = vmatprep.subr.mxu0 0.0
    %686 = vmatpush1.xpose.msra.mxu0 %v683
    %687 = vmatprep.subr.mxu0 0.0
    %688 = vmatpush1.xpose.msra.mxu0 0.0
    %689 = vmatprep.subr.mxu0 0.0
    %690 = vmatpush1.xpose.msra.mxu0 0.0
    %691 = vmatprep.subr.mxu0 0.0
    %692 = vmatpush1.xpose.msra.mxu0 0.0
    %693 = vmatprep.subr.mxu0 0.0
    %694 = vmatpush1.xpose.msra.mxu0 0.0
    %695 = vmatprep.subr.mxu0 0.0
    %696 = vmatpush1.xpose.msra.mxu0 0.0
    %697 = vmatprep.subr.mxu0 0.0
    %698 = vmatpush1.xpose.msra.mxu0 0.0
    %699 = vmatprep.subr.mxu0 0.0
    %700 = vmatpush1.xpose.msra.mxu0 0.0
    %701 = vmatprep.subr.mxu0 0.0
    %702 = vmatpush1.xpose.msra.mxu0 0.0
    %703 = vmatprep.subr.mxu0 0.0
    %704 = vmatpush1.xpose.msra.mxu0 0.0
    %705 = vmatprep.subr.mxu0 0.0
    %706 = vmatpush1.xpose.msra.mxu0 0.0
    %707 = vmatprep.subr.mxu0 0.0
    %708 = vmatpush1.xpose.msra.mxu0 0.0
    %709 = vmatprep.subr.mxu0 0.0
    %710 = vmatpush1.xpose.msra.mxu0 0.0
    %711 = vmatprep.subr.mxu0 0.0
    %712 = vmatpush1.xpose.msra.mxu0 0.0
    %713 = vmatprep.subr.mxu0 0.0
    %714 = vmatpush1.xpose.msra.mxu0 0.0
    %715 = vmatprep.subr.mxu0 0.0
    %716 = vmatpush1.xpose.msra.mxu0 0.0
    %717 = vmatprep.subr.mxu0 0.0
    %718 = vmatpush1.xpose.msra.mxu0 0.0
    %719 = vmatprep.subr.mxu0 0.0
    %720 = vmatpush1.xpose.msra.mxu0 0.0
    %721 = vmatprep.subr.mxu0 0.0
    %722 = vmatpush1.xpose.msra.mxu0 0.0
    %723 = vmatprep.subr.mxu0 0.0
    %724 = vmatpush1.xpose.msra.mxu0 0.0
    %725 = vmatprep.subr.mxu0 0.0
    %726 = vmatpush1.xpose.msra.mxu0 0.0
    %727 = vmatprep.subr.mxu0 0.0
    %728 = vmatpush1.xpose.msra.mxu0 0.0
    %729 = vmatprep.subr.mxu0 0.0
    %730 = vmatpush1.xpose.msra.mxu0 0.0
    %731 = vmatprep.subr.mxu0 0.0
    %732 = vmatpush1.xpose.msra.mxu0 0.0
    %733 = vmatprep.subr.mxu0 0.0
    %734 = vmatpush1.xpose.msra.mxu0 0.0
    %735 = vmatprep.subr.mxu0 0.0
    %736 = vmatpush1.xpose.msra.mxu0 0.0
    %737 = vmatprep.subr.mxu0 0.0
    %738 = vmatpush1.xpose.msra.mxu0 0.0
    %739 = vmatprep.subr.mxu0 0.0
    %740 = vmatpush1.xpose.msra.mxu0 0.0
    %741 = vmatprep.subr.mxu0 0.0
    %742 = vmatpush1.xpose.msra.mxu0 0.0
    %743 = vmatprep.subr.mxu0 0.0
    %744 = vmatpush1.xpose.msra.mxu0 0.0
    %745 = vmatprep.subr.mxu0 0.0
    %746 = vmatpush1.xpose.msra.mxu0 0.0
    %747 = vmatprep.subr.mxu0 0.0
    %748 = vmatpush1.xpose.msra.mxu0 0.0
    %749 = vmatprep.mubr.f32.mxu0 0.0
    %750 = vmatmul.mubr.f32.gmra.mrb[0].mxu0 %v681
    %v751 = vpop.f32.mrb[0].mxu0
    %v752 = vadd.f32 0.0, %v751
    %v753 = vpop.f32.mrb[0].mxu0
    %754 = vdwg.mxu0
    %v755 = vsel %vm185, %v674, -inf
    %756 = vmax.xlane.f32.xlu0 %v755
    %v757 = vpop.xlane.xlu0 %756
    %v758 = vsel %vm185, %v752, -inf
    %759 = vmax.xlane.f32.xlu0 %v758
    %v760 = vpop.xlane.xlu0 %759
    %v761 = vsub.f32 %v674, %v757
    %v762 = vsub.f32 %v752, %v760
    %v763 = vmul.f32 %v761, 1.442695
    %v764 = vpow.pop %v763
    %v765 = vmul.f32 %v762, 1.442695
    %v766 = vpow.pop %v765
    %v767 = vsel %vm185, %v764, 0.0
    %768 = vadd.xlane.f32.xlu0 %v767
    %v769 = vpop.xlane.xlu0 %768
    %v770 = vsel %vm185, %v766, 0.0
    %771 = vadd.xlane.f32.xlu0 %v770
    %v772 = vpop.xlane.xlu0 %771
    %v773 = vrcp.pop %v769
    %v774 = vmul.f32 %v764, %v773
    %v775 = vrcp.pop %v772
    %v776 = vmul.f32 %v766, %v775
    %777 = vrot.lane.b32.xlu0 %v174, 56
    %v778 = vpop.permute.xlu0 %777
    %v781 = vsel %vm185, %v774, 0
    %783 = vmatprep.subr.mxu0 0.0
    %784 = vmatpush1.msra.mxu0 %v778
    %785 = vmatprep.subr.mxu0 0.0
    %786 = vmatpush1.msra.mxu0 0.0
    %787 = vmatprep.subr.mxu0 0.0
    %788 = vmatpush1.msra.mxu0 0.0
    %789 = vmatprep.subr.mxu0 0.0
    %790 = vmatpush1.msra.mxu0 0.0
    %791 = vmatprep.subr.mxu0 0.0
    %792 = vmatpush1.msra.mxu0 0.0
    %793 = vmatprep.subr.mxu0 0.0
    %794 = vmatpush1.msra.mxu0 0.0
    %795 = vmatprep.subr.mxu0 0.0
    %796 = vmatpush1.msra.mxu0 0.0
    %797 = vmatprep.subr.mxu0 0.0
    %798 = vmatpush1.msra.mxu0 0.0
    %799 = vmatprep.subr.mxu0 0.0
    %800 = vmatpush1.msra.mxu0 0.0
    %801 = vmatprep.subr.mxu0 0.0
    %802 = vmatpush1.msra.mxu0 0.0
    %803 = vmatprep.subr.mxu0 0.0
    %804 = vmatpush1.msra.mxu0 0.0
    %805 = vmatprep.subr.mxu0 0.0
    %806 = vmatpush1.msra.mxu0 0.0
    %807 = vmatprep.subr.mxu0 0.0
    %808 = vmatpush1.msra.mxu0 0.0
    %809 = vmatprep.subr.mxu0 0.0
    %810 = vmatpush1.msra.mxu0 0.0
    %811 = vmatprep.subr.mxu0 0.0
    %812 = vmatpush1.msra.mxu0 0.0
    %813 = vmatprep.subr.mxu0 0.0
    %814 = vmatpush1.msra.mxu0 0.0
    %815 = vmatprep.subr.mxu0 0.0
    %816 = vmatpush1.msra.mxu0 0.0
    %817 = vmatprep.subr.mxu0 0.0
    %818 = vmatpush1.msra.mxu0 0.0
    %819 = vmatprep.subr.mxu0 0.0
    %820 = vmatpush1.msra.mxu0 0.0
    %821 = vmatprep.subr.mxu0 0.0
    %822 = vmatpush1.msra.mxu0 0.0
    %823 = vmatprep.subr.mxu0 0.0
    %824 = vmatpush1.msra.mxu0 0.0
    %825 = vmatprep.subr.mxu0 0.0
    %826 = vmatpush1.msra.mxu0 0.0
    %827 = vmatprep.subr.mxu0 0.0
    %828 = vmatpush1.msra.mxu0 0.0
    %829 = vmatprep.subr.mxu0 0.0
    %830 = vmatpush1.msra.mxu0 0.0
    %831 = vmatprep.subr.mxu0 0.0
    %832 = vmatpush1.msra.mxu0 0.0
    %833 = vmatprep.subr.mxu0 0.0
    %834 = vmatpush1.msra.mxu0 0.0
    %835 = vmatprep.subr.mxu0 0.0
    %836 = vmatpush1.msra.mxu0 0.0
    %837 = vmatprep.subr.mxu0 0.0
    %838 = vmatpush1.msra.mxu0 0.0
    %839 = vmatprep.subr.mxu0 0.0
    %840 = vmatpush1.msra.mxu0 0.0
    %841 = vmatprep.subr.mxu0 0.0
    %842 = vmatpush1.msra.mxu0 0.0
    %843 = vmatprep.subr.mxu0 0.0
    %844 = vmatpush1.msra.mxu0 0.0
    %845 = vmatprep.subr.mxu0 0.0
    %846 = vmatpush1.msra.mxu0 0.0
    %847 = vmatprep.mubr.f32.mxu0 0.0
    %848 = vmatmul.mubr.f32.gmra.mrb[0].mxu0 %v781
    %v849 = vpop.f32.mrb[0].mxu0
    %v850 = vadd.f32 0.0, %v849
    %v851 = vpop.f32.mrb[0].mxu0
    %852 = vdwg.mxu0
    %853 = vrot.lane.b32.xlu0 %v179, 56
    %v854 = vpop.permute.xlu0 %853
    %v857 = vsel %vm185, %v776, 0
    %859 = vmatprep.subr.mxu0 0.0
    %860 = vmatpush1.msra.mxu0 %v854
    %861 = vmatprep.subr.mxu0 0.0
    %862 = vmatpush1.msra.mxu0 0.0
    %863 = vmatprep.subr.mxu0 0.0
    %864 = vmatpush1.msra.mxu0 0.0
    %865 = vmatprep.subr.mxu0 0.0
    %866 = vmatpush1.msra.mxu0 0.0
    %867 = vmatprep.subr.mxu0 0.0
    %868 = vmatpush1.msra.mxu0 0.0
    %869 = vmatprep.subr.mxu0 0.0
    %870 = vmatpush1.msra.mxu0 0.0
    %871 = vmatprep.subr.mxu0 0.0
    %872 = vmatpush1.msra.mxu0 0.0
    %873 = vmatprep.subr.mxu0 0.0
    %874 = vmatpush1.msra.mxu0 0.0
    %875 = vmatprep.subr.mxu0 0.0
    %876 = vmatpush1.msra.mxu0 0.0
    %877 = vmatprep.subr.mxu0 0.0
    %878 = vmatpush1.msra.mxu0 0.0
    %879 = vmatprep.subr.mxu0 0.0
    %880 = vmatpush1.msra.mxu0 0.0
    %881 = vmatprep.subr.mxu0 0.0
    %882 = vmatpush1.msra.mxu0 0.0
    %883 = vmatprep.subr.mxu0 0.0
    %884 = vmatpush1.msra.mxu0 0.0
    %885 = vmatprep.subr.mxu0 0.0
    %886 = vmatpush1.msra.mxu0 0.0
    %887 = vmatprep.subr.mxu0 0.0
    %888 = vmatpush1.msra.mxu0 0.0
    %889 = vmatprep.subr.mxu0 0.0
    %890 = vmatpush1.msra.mxu0 0.0
    %891 = vmatprep.subr.mxu0 0.0
    %892 = vmatpush1.msra.mxu0 0.0
    %893 = vmatprep.subr.mxu0 0.0
    %894 = vmatpush1.msra.mxu0 0.0
    %895 = vmatprep.subr.mxu0 0.0
    %896 = vmatpush1.msra.mxu0 0.0
    %897 = vmatprep.subr.mxu0 0.0
    %898 = vmatpush1.msra.mxu0 0.0
    %899 = vmatprep.subr.mxu0 0.0
    %900 = vmatpush1.msra.mxu0 0.0
    %901 = vmatprep.subr.mxu0 0.0
    %902 = vmatpush1.msra.mxu0 0.0
    %903 = vmatprep.subr.mxu0 0.0
    %904 = vmatpush1.msra.mxu0 0.0
    %905 = vmatprep.subr.mxu0 0.0
    %906 = vmatpush1.msra.mxu0 0.0
    %907 = vmatprep.subr.mxu0 0.0
    %908 = vmatpush1.msra.mxu0 0.0
    %909 = vmatprep.subr.mxu0 0.0
    %910 = vmatpush1.msra.mxu0 0.0
    %911 = vmatprep.subr.mxu0 0.0
    %912 = vmatpush1.msra.mxu0 0.0
    %913 = vmatprep.subr.mxu0 0.0
    %914 = vmatpush1.msra.mxu0 0.0
    %915 = vmatprep.subr.mxu0 0.0
    %916 = vmatpush1.msra.mxu0 0.0
    %917 = vmatprep.subr.mxu0 0.0
    %918 = vmatpush1.msra.mxu0 0.0
    %919 = vmatprep.subr.mxu0 0.0
    %920 = vmatpush1.msra.mxu0 0.0
    %921 = vmatprep.subr.mxu0 0.0
    %922 = vmatpush1.msra.mxu0 0.0
    %923 = vmatprep.mubr.f32.mxu0 0.0
    %924 = vmatmul.mubr.f32.gmra.mrb[0].mxu0 %v857
    %v925 = vpop.f32.mrb[0].mxu0
    %v926 = vadd.f32 0.0, %v925
    %v927 = vpop.f32.mrb[0].mxu0
    %928 = vdwg.mxu0
    %v929 = vld [vmem:[%s3 + $0x8] sm:$0xff]
    %v931 = vsel %vm185, %v850, 0
    %v934 = vsel %vm185, %v926, 0
    %936 = vmatprep.subr.mxu0 0.0
    %937 = vmatpush1.msra.mxu0 %v929
    %938 = vmatprep.subr.mxu0 0.0
    %939 = vmatpush1.msra.mxu0 0.0
    %940 = vmatprep.subr.mxu0 0.0
    %941 = vmatpush1.msra.mxu0 0.0
    %942 = vmatprep.subr.mxu0 0.0
    %943 = vmatpush1.msra.mxu0 0.0
    %944 = vmatprep.subr.mxu0 0.0
    %945 = vmatpush1.msra.mxu0 0.0
    %946 = vmatprep.subr.mxu0 0.0
    %947 = vmatpush1.msra.mxu0 0.0
    %948 = vmatprep.subr.mxu0 0.0
    %949 = vmatpush1.msra.mxu0 0.0
    %950 = vmatprep.subr.mxu0 0.0
    %951 = vmatpush1.msra.mxu0 0.0
    %952 = vmatprep.subr.mxu0 0.0
    %953 = vmatpush1.msra.mxu0 0.0
    %954 = vmatprep.subr.mxu0 0.0
    %955 = vmatpush1.msra.mxu0 0.0
    %956 = vmatprep.subr.mxu0 0.0
    %957 = vmatpush1.msra.mxu0 0.0
    %958 = vmatprep.subr.mxu0 0.0
    %959 = vmatpush1.msra.mxu0 0.0
    %960 = vmatprep.subr.mxu0 0.0
    %961 = vmatpush1.msra.mxu0 0.0
    %962 = vmatprep.subr.mxu0 0.0
    %963 = vmatpush1.msra.mxu0 0.0
    %964 = vmatprep.subr.mxu0 0.0
    %965 = vmatpush1.msra.mxu0 0.0
    %966 = vmatprep.subr.mxu0 0.0
    %967 = vmatpush1.msra.mxu0 0.0
    %968 = vmatprep.subr.mxu0 0.0
    %969 = vmatpush1.msra.mxu0 0.0
    %970 = vmatprep.subr.mxu0 0.0
    %971 = vmatpush1.msra.mxu0 0.0
    %972 = vmatprep.subr.mxu0 0.0
    %973 = vmatpush1.msra.mxu0 0.0
    %974 = vmatprep.subr.mxu0 0.0
    %975 = vmatpush1.msra.mxu0 0.0
    %976 = vmatprep.subr.mxu0 0.0
    %977 = vmatpush1.msra.mxu0 0.0
    %978 = vmatprep.subr.mxu0 0.0
    %979 = vmatpush1.msra.mxu0 0.0
    %980 = vmatprep.subr.mxu0 0.0
    %981 = vmatpush1.msra.mxu0 0.0
    %982 = vmatprep.subr.mxu0 0.0
    %983 = vmatpush1.msra.mxu0 0.0
    %984 = vmatprep.subr.mxu0 0.0
    %985 = vmatpush1.msra.mxu0 0.0
    %986 = vmatprep.subr.mxu0 0.0
    %987 = vmatpush1.msra.mxu0 0.0
    %988 = vmatprep.subr.mxu0 0.0
    %989 = vmatpush1.msra.mxu0 0.0
    %990 = vmatprep.subr.mxu0 0.0
    %991 = vmatpush1.msra.mxu0 0.0
    %992 = vmatprep.subr.mxu0 0.0
    %993 = vmatpush1.msra.mxu0 0.0
    %994 = vmatprep.subr.mxu0 0.0
    %995 = vmatpush1.msra.mxu0 0.0
    %996 = vmatprep.subr.mxu0 0.0
    %997 = vmatpush1.msra.mxu0 0.0
    %998 = vmatprep.subr.mxu0 0.0
    %999 = vmatpush1.msra.mxu0 0.0
    %1000 = vmatprep.mubr.f32.mxu0 0.0
    %1001 = vmatmul.mubr.f32.gmra.mrb[0].mxu0 %v931
    %v1002 = vpop.f32.mrb[0].mxu0
    %v1003 = vadd.f32 0.0, %v1002
    %v1004 = vpop.f32.mrb[0].mxu0
    %1005 = vmatprep.mubr.f32.mxu0 0.0
    %1006 = vmatmul.mubr.f32.gmra.mrb[0].mxu0 %v934
    %v1007 = vpop.f32.mrb[0].mxu0
    %v1008 = vadd.f32 0.0, %v1007
    %v1009 = vpop.f32.mrb[0].mxu0
    %1010 = vdwg.mxu0
    %v1011 = vadd.f32 %v597, %v1003
    %v1012 = vadd.f32 %v598, %v1008
    %1013 = vrot.lane.b32.xlu0 %v174, 112
    %v1014 = vpop.permute.xlu0 %1013
    %1015 = vrot.lane.b32.xlu0 %v174, 80
    %v1016 = vpop.permute.xlu0 %1015
    %v1017 = vsel %vm185, %v1014, 0
    %v1019 = vsel %vm185, %v1016, 0
    %1021 = vmatprep.subr.mxu0 0.0
    %1022 = vmatpush1.xpose.msra.mxu0 %v1019
    %1023 = vmatprep.subr.mxu0 0.0
    %1024 = vmatpush1.xpose.msra.mxu0 0.0
    %1025 = vmatprep.subr.mxu0 0.0
    %1026 = vmatpush1.xpose.msra.mxu0 0.0
    %1027 = vmatprep.subr.mxu0 0.0
    %1028 = vmatpush1.xpose.msra.mxu0 0.0
    %1029 = vmatprep.subr.mxu0 0.0
    %1030 = vmatpush1.xpose.msra.mxu0 0.0
    %1031 = vmatprep.subr.mxu0 0.0
    %1032 = vmatpush1.xpose.msra.mxu0 0.0
    %1033 = vmatprep.subr.mxu0 0.0
    %1034 = vmatpush1.xpose.msra.mxu0 0.0
    %1035 = vmatprep.subr.mxu0 0.0
    %1036 = vmatpush1.xpose.msra.mxu0 0.0
    %1037 = vmatprep.subr.mxu0 0.0
    %1038 = vmatpush1.xpose.msra.mxu0 0.0
    %1039 = vmatprep.subr.mxu0 0.0
    %1040 = vmatpush1.xpose.msra.mxu0 0.0
    %1041 = vmatprep.subr.mxu0 0.0
    %1042 = vmatpush1.xpose.msra.mxu0 0.0
    %1043 = vmatprep.subr.mxu0 0.0
    %1044 = vmatpush1.xpose.msra.mxu0 0.0
    %1045 = vmatprep.subr.mxu0 0.0
    %1046 = vmatpush1.xpose.msra.mxu0 0.0
    %1047 = vmatprep.subr.mxu0 0.0
    %1048 = vmatpush1.xpose.msra.mxu0 0.0
    %1049 = vmatprep.subr.mxu0 0.0
    %1050 = vmatpush1.xpose.msra.mxu0 0.0
    %1051 = vmatprep.subr.mxu0 0.0
    %1052 = vmatpush1.xpose.msra.mxu0 0.0
    %1053 = vmatprep.subr.mxu0 0.0
    %1054 = vmatpush1.xpose.msra.mxu0 0.0
    %1055 = vmatprep.subr.mxu0 0.0
    %1056 = vmatpush1.xpose.msra.mxu0 0.0
    %1057 = vmatprep.subr.mxu0 0.0
    %1058 = vmatpush1.xpose.msra.mxu0 0.0
    %1059 = vmatprep.subr.mxu0 0.0
    %1060 = vmatpush1.xpose.msra.mxu0 0.0
    %1061 = vmatprep.subr.mxu0 0.0
    %1062 = vmatpush1.xpose.msra.mxu0 0.0
    %1063 = vmatprep.subr.mxu0 0.0
    %1064 = vmatpush1.xpose.msra.mxu0 0.0
    %1065 = vmatprep.subr.mxu0 0.0
    %1066 = vmatpush1.xpose.msra.mxu0 0.0
    %1067 = vmatprep.subr.mxu0 0.0
    %1068 = vmatpush1.xpose.msra.mxu0 0.0
    %1069 = vmatprep.subr.mxu0 0.0
    %1070 = vmatpush1.xpose.msra.mxu0 0.0
    %1071 = vmatprep.subr.mxu0 0.0
    %1072 = vmatpush1.xpose.msra.mxu0 0.0
    %1073 = vmatprep.subr.mxu0 0.0
    %1074 = vmatpush1.xpose.msra.mxu0 0.0
    %1075 = vmatprep.subr.mxu0 0.0
    %1076 = vmatpush1.xpose.msra.mxu0 0.0
    %1077 = vmatprep.subr.mxu0 0.0
    %1078 = vmatpush1.xpose.msra.mxu0 0.0
    %1079 = vmatprep.subr.mxu0 0.0
    %1080 = vmatpush1.xpose.msra.mxu0 0.0
    %1081 = vmatprep.subr.mxu0 0.0
    %1082 = vmatpush1.xpose.msra.mxu0 0.0
    %1083 = vmatprep.subr.mxu0 0.0
    %1084 = vmatpush1.xpose.msra.mxu0 0.0
    %1085 = vmatprep.mubr.f32.mxu0 0.0
    %1086 = vmatmul.mubr.f32.gmra.mrb[0].mxu0 %v1017
    %v1087 = vpop.f32.mrb[0].mxu0
    %v1088 = vadd.f32 0.0, %v1087
    %v1089 = vpop.f32.mrb[0].mxu0
    %1090 = vdwg.mxu0
    %1091 = vrot.lane.b32.xlu0 %v179, 112
    %v1092 = vpop.permute.xlu0 %1091
    %1093 = vrot.lane.b32.xlu0 %v179, 80
    %v1094 = vpop.permute.xlu0 %1093
    %v1095 = vsel %vm185, %v1092, 0
    %v1097 = vsel %vm185, %v1094, 0
    %1099 = vmatprep.subr.mxu0 0.0
    %1100 = vmatpush1.xpose.msra.mxu0 %v1097
    %1101 = vmatprep.subr.mxu0 0.0
    %1102 = vmatpush1.xpose.msra.mxu0 0.0
    %1103 = vmatprep.subr.mxu0 0.0
    %1104 = vmatpush1.xpose.msra.mxu0 0.0
    %1105 = vmatprep.subr.mxu0 0.0
    %1106 = vmatpush1.xpose.msra.mxu0 0.0
    %1107 = vmatprep.subr.mxu0 0.0
    %1108 = vmatpush1.xpose.msra.mxu0 0.0
    %1109 = vmatprep.subr.mxu0 0.0
    %1110 = vmatpush1.xpose.msra.mxu0 0.0
    %1111 = vmatprep.subr.mxu0 0.0
    %1112 = vmatpush1.xpose.msra.mxu0 0.0
    %1113 = vmatprep.subr.mxu0 0.0
    %1114 = vmatpush1.xpose.msra.mxu0 0.0
    %1115 = vmatprep.subr.mxu0 0.0
    %1116 = vmatpush1.xpose.msra.mxu0 0.0
    %1117 = vmatprep.subr.mxu0 0.0
    %1118 = vmatpush1.xpose.msra.mxu0 0.0
    %1119 = vmatprep.subr.mxu0 0.0
    %1120 = vmatpush1.xpose.msra.mxu0 0.0
    %1121 = vmatprep.subr.mxu0 0.0
    %1122 = vmatpush1.xpose.msra.mxu0 0.0
    %1123 = vmatprep.subr.mxu0 0.0
    %1124 = vmatpush1.xpose.msra.mxu0 0.0
    %1125 = vmatprep.subr.mxu0 0.0
    %1126 = vmatpush1.xpose.msra.mxu0 0.0
    %1127 = vmatprep.subr.mxu0 0.0
    %1128 = vmatpush1.xpose.msra.mxu0 0.0
    %1129 = vmatprep.subr.mxu0 0.0
    %1130 = vmatpush1.xpose.msra.mxu0 0.0
    %1131 = vmatprep.subr.mxu0 0.0
    %1132 = vmatpush1.xpose.msra.mxu0 0.0
    %1133 = vmatprep.subr.mxu0 0.0
    %1134 = vmatpush1.xpose.msra.mxu0 0.0
    %1135 = vmatprep.subr.mxu0 0.0
    %1136 = vmatpush1.xpose.msra.mxu0 0.0
    %1137 = vmatprep.subr.mxu0 0.0
    %1138 = vmatpush1.xpose.msra.mxu0 0.0
    %1139 = vmatprep.subr.mxu0 0.0
    %1140 = vmatpush1.xpose.msra.mxu0 0.0
    %1141 = vmatprep.subr.mxu0 0.0
    %1142 = vmatpush1.xpose.msra.mxu0 0.0
    %1143 = vmatprep.subr.mxu0 0.0
    %1144 = vmatpush1.xpose.msra.mxu0 0.0
    %1145 = vmatprep.subr.mxu0 0.0
    %1146 = vmatpush1.xpose.msra.mxu0 0.0
    %1147 = vmatprep.subr.mxu0 0.0
    %1148 = vmatpush1.xpose.msra.mxu0 0.0
    %1149 = vmatprep.subr.mxu0 0.0
    %1150 = vmatpush1.xpose.msra.mxu0 0.0
    %1151 = vmatprep.subr.mxu0 0.0
    %1152 = vmatpush1.xpose.msra.mxu0 0.0
    %1153 = vmatprep.subr.mxu0 0.0
    %1154 = vmatpush1.xpose.msra.mxu0 0.0
    %1155 = vmatprep.subr.mxu0 0.0
    %1156 = vmatpush1.xpose.msra.mxu0 0.0
    %1157 = vmatprep.subr.mxu0 0.0
    %1158 = vmatpush1.xpose.msra.mxu0 0.0
    %1159 = vmatprep.subr.mxu0 0.0
    %1160 = vmatpush1.xpose.msra.mxu0 0.0
    %1161 = vmatprep.subr.mxu0 0.0
    %1162 = vmatpush1.xpose.msra.mxu0 0.0
    %1163 = vmatprep.mubr.f32.mxu0 0.0
    %1164 = vmatmul.mubr.f32.gmra.mrb[0].mxu0 %v1095
    %v1165 = vpop.f32.mrb[0].mxu0
    %v1166 = vadd.f32 0.0, %v1165
    %v1167 = vpop.f32.mrb[0].mxu0
    %1168 = vdwg.mxu0
    %v1169 = vsel %vm185, %v1088, -inf
    %1170 = vmax.xlane.f32.xlu0 %v1169
    %v1171 = vpop.xlane.xlu0 %1170
    %v1172 = vsel %vm185, %v1166, -inf
    %1173 = vmax.xlane.f32.xlu0 %v1172
    %v1174 = vpop.xlane.xlu0 %1173
    %v1175 = vsub.f32 %v1088, %v1171
    %v1176 = vsub.f32 %v1166, %v1174
    %v1177 = vmul.f32 %v1175, 1.442695
    %v1178 = vpow.pop %v1177
    %v1179 = vmul.f32 %v1176, 1.442695
    %v1180 = vpow.pop %v1179
    %v1181 = vsel %vm185, %v1178, 0.0
    %1182 = vadd.xlane.f32.xlu0 %v1181
    %v1183 = vpop.xlane.xlu0 %1182
    %v1184 = vsel %vm185, %v1180, 0.0
    %1185 = vadd.xlane.f32.xlu0 %v1184
    %v1186 = vpop.xlane.xlu0 %1185
    %v1187 = vrcp.pop %v1183
    %v1188 = vmul.f32 %v1178, %v1187
    %v1189 = vrcp.pop %v1186
    %v1190 = vmul.f32 %v1180, %v1189
    %1191 = vrot.lane.b32.xlu0 %v174, 48
    %v1192 = vpop.permute.xlu0 %1191
    %v1195 = vsel %vm185, %v1188, 0
    %1197 = vmatprep.subr.mxu0 0.0
    %1198 = vmatpush1.msra.mxu0 %v1192
    %1199 = vmatprep.subr.mxu0 0.0
    %1200 = vmatpush1.msra.mxu0 0.0
    %1201 = vmatprep.subr.mxu0 0.0
    %1202 = vmatpush1.msra.mxu0 0.0
    %1203 = vmatprep.subr.mxu0 0.0
    %1204 = vmatpush1.msra.mxu0 0.0
    %1205 = vmatprep.subr.mxu0 0.0
    %1206 = vmatpush1.msra.mxu0 0.0
    %1207 = vmatprep.subr.mxu0 0.0
    %1208 = vmatpush1.msra.mxu0 0.0
    %1209 = vmatprep.subr.mxu0 0.0
    %1210 = vmatpush1.msra.mxu0 0.0
    %1211 = vmatprep.subr.mxu0 0.0
    %1212 = vmatpush1.msra.mxu0 0.0
    %1213 = vmatprep.subr.mxu0 0.0
    %1214 = vmatpush1.msra.mxu0 0.0
    %1215 = vmatprep.subr.mxu0 0.0
    %1216 = vmatpush1.msra.mxu0 0.0
    %1217 = vmatprep.subr.mxu0 0.0
    %1218 = vmatpush1.msra.mxu0 0.0
    %1219 = vmatprep.subr.mxu0 0.0
    %1220 = vmatpush1.msra.mxu0 0.0
    %1221 = vmatprep.subr.mxu0 0.0
    %1222 = vmatpush1.msra.mxu0 0.0
    %1223 = vmatprep.subr.mxu0 0.0
    %1224 = vmatpush1.msra.mxu0 0.0
    %1225 = vmatprep.subr.mxu0 0.0
    %1226 = vmatpush1.msra.mxu0 0.0
    %1227 = vmatprep.subr.mxu0 0.0
    %1228 = vmatpush1.msra.mxu0 0.0
    %1229 = vmatprep.subr.mxu0 0.0
    %1230 = vmatpush1.msra.mxu0 0.0
    %1231 = vmatprep.subr.mxu0 0.0
    %1232 = vmatpush1.msra.mxu0 0.0
    %1233 = vmatprep.subr.mxu0 0.0
    %1234 = vmatpush1.msra.mxu0 0.0
    %1235 = vmatprep.subr.mxu0 0.0
    %1236 = vmatpush1.msra.mxu0 0.0
    %1237 = vmatprep.subr.mxu0 0.0
    %1238 = vmatpush1.msra.mxu0 0.0
    %1239 = vmatprep.subr.mxu0 0.0
    %1240 = vmatpush1.msra.mxu0 0.0
    %1241 = vmatprep.subr.mxu0 0.0
    %1242 = vmatpush1.msra.mxu0 0.0
    %1243 = vmatprep.subr.mxu0 0.0
    %1244 = vmatpush1.msra.mxu0 0.0
    %1245 = vmatprep.subr.mxu0 0.0
    %1246 = vmatpush1.msra.mxu0 0.0
    %1247 = vmatprep.subr.mxu0 0.0
    %1248 = vmatpush1.msra.mxu0 0.0
    %1249 = vmatprep.subr.mxu0 0.0
    %1250 = vmatpush1.msra.mxu0 0.0
    %1251 = vmatprep.subr.mxu0 0.0
    %1252 = vmatpush1.msra.mxu0 0.0
    %1253 = vmatprep.subr.mxu0 0.0
    %1254 = vmatpush1.msra.mxu0 0.0
    %1255 = vmatprep.subr.mxu0 0.0
    %1256 = vmatpush1.msra.mxu0 0.0
    %1257 = vmatprep.subr.mxu0 0.0
    %1258 = vmatpush1.msra.mxu0 0.0
    %1259 = vmatprep.subr.mxu0 0.0
    %1260 = vmatpush1.msra.mxu0 0.0
    %1261 = vmatprep.mubr.f32.mxu0 0.0
    %1262 = vmatmul.mubr.f32.gmra.mrb[0].mxu0 %v1195
    %v1263 = vpop.f32.mrb[0].mxu0
    %v1264 = vadd.f32 0.0, %v1263
    %v1265 = vpop.f32.mrb[0].mxu0
    %1266 = vdwg.mxu0
    %1267 = vrot.lane.b32.xlu0 %v179, 48
    %v1268 = vpop.permute.xlu0 %1267
    %v1271 = vsel %vm185, %v1190, 0
    %1273 = vmatprep.subr.mxu0 0.0
    %1274 = vmatpush1.msra.mxu0 %v1268
    %1275 = vmatprep.subr.mxu0 0.0
    %1276 = vmatpush1.msra.mxu0 0.0
    %1277 = vmatprep.subr.mxu0 0.0
    %1278 = vmatpush1.msra.mxu0 0.0
    %1279 = vmatprep.subr.mxu0 0.0
    %1280 = vmatpush1.msra.mxu0 0.0
    %1281 = vmatprep.subr.mxu0 0.0
    %1282 = vmatpush1.msra.mxu0 0.0
    %1283 = vmatprep.subr.mxu0 0.0
    %1284 = vmatpush1.msra.mxu0 0.0
    %1285 = vmatprep.subr.mxu0 0.0
    %1286 = vmatpush1.msra.mxu0 0.0
    %1287 = vmatprep.subr.mxu0 0.0
    %1288 = vmatpush1.msra.mxu0 0.0
    %1289 = vmatprep.subr.mxu0 0.0
    %1290 = vmatpush1.msra.mxu0 0.0
    %1291 = vmatprep.subr.mxu0 0.0
    %1292 = vmatpush1.msra.mxu0 0.0
    %1293 = vmatprep.subr.mxu0 0.0
    %1294 = vmatpush1.msra.mxu0 0.0
    %1295 = vmatprep.subr.mxu0 0.0
    %1296 = vmatpush1.msra.mxu0 0.0
    %1297 = vmatprep.subr.mxu0 0.0
    %1298 = vmatpush1.msra.mxu0 0.0
    %1299 = vmatprep.subr.mxu0 0.0
    %1300 = vmatpush1.msra.mxu0 0.0
    %1301 = vmatprep.subr.mxu0 0.0
    %1302 = vmatpush1.msra.mxu0 0.0
    %1303 = vmatprep.subr.mxu0 0.0
    %1304 = vmatpush1.msra.mxu0 0.0
    %1305 = vmatprep.subr.mxu0 0.0
    %1306 = vmatpush1.msra.mxu0 0.0
    %1307 = vmatprep.subr.mxu0 0.0
    %1308 = vmatpush1.msra.mxu0 0.0
    %1309 = vmatprep.subr.mxu0 0.0
    %1310 = vmatpush1.msra.mxu0 0.0
    %1311 = vmatprep.subr.mxu0 0.0
    %1312 = vmatpush1.msra.mxu0 0.0
    %1313 = vmatprep.subr.mxu0 0.0
    %1314 = vmatpush1.msra.mxu0 0.0
    %1315 = vmatprep.subr.mxu0 0.0
    %1316 = vmatpush1.msra.mxu0 0.0
    %1317 = vmatprep.subr.mxu0 0.0
    %1318 = vmatpush1.msra.mxu0 0.0
    %1319 = vmatprep.subr.mxu0 0.0
    %1320 = vmatpush1.msra.mxu0 0.0
    %1321 = vmatprep.subr.mxu0 0.0
    %1322 = vmatpush1.msra.mxu0 0.0
    %1323 = vmatprep.subr.mxu0 0.0
    %1324 = vmatpush1.msra.mxu0 0.0
    %1325 = vmatprep.subr.mxu0 0.0
    %1326 = vmatpush1.msra.mxu0 0.0
    %1327 = vmatprep.subr.mxu0 0.0
    %1328 = vmatpush1.msra.mxu0 0.0
    %1329 = vmatprep.subr.mxu0 0.0
    %1330 = vmatpush1.msra.mxu0 0.0
    %1331 = vmatprep.subr.mxu0 0.0
    %1332 = vmatpush1.msra.mxu0 0.0
    %1333 = vmatprep.subr.mxu0 0.0
    %1334 = vmatpush1.msra.mxu0 0.0
    %1335 = vmatprep.subr.mxu0 0.0
    %1336 = vmatpush1.msra.mxu0 0.0
    %1337 = vmatprep.mubr.f32.mxu0 0.0
    %1338 = vmatmul.mubr.f32.gmra.mrb[0].mxu0 %v1271
    %v1339 = vpop.f32.mrb[0].mxu0
    %v1340 = vadd.f32 0.0, %v1339
    %v1341 = vpop.f32.mrb[0].mxu0
    %1342 = vdwg.mxu0
    %v1343 = vld [vmem:[%s3 + $0x10] sm:$0xff]
    %v1345 = vsel %vm185, %v1264, 0
    %v1348 = vsel %vm185, %v1340, 0
    %1350 = vmatprep.subr.mxu0 0.0
    %1351 = vmatpush1.msra.mxu0 %v1343
    %1352 = vmatprep.subr.mxu0 0.0
    %1353 = vmatpush1.msra.mxu0 0.0
    %1354 = vmatprep.subr.mxu0 0.0
    %1355 = vmatpush1.msra.mxu0 0.0
    %1356 = vmatprep.subr.mxu0 0.0
    %1357 = vmatpush1.msra.mxu0 0.0
    %1358 = vmatprep.subr.mxu0 0.0
    %1359 = vmatpush1.msra.mxu0 0.0
    %1360 = vmatprep.subr.mxu0 0.0
    %1361 = vmatpush1.msra.mxu0 0.0
    %1362 = vmatprep.subr.mxu0 0.0
    %1363 = vmatpush1.msra.mxu0 0.0
    %1364 = vmatprep.subr.mxu0 0.0
    %1365 = vmatpush1.msra.mxu0 0.0
    %1366 = vmatprep.subr.mxu0 0.0
    %1367 = vmatpush1.msra.mxu0 0.0
    %1368 = vmatprep.subr.mxu0 0.0
    %1369 = vmatpush1.msra.mxu0 0.0
    %1370 = vmatprep.subr.mxu0 0.0
    %1371 = vmatpush1.msra.mxu0 0.0
    %1372 = vmatprep.subr.mxu0 0.0
    %1373 = vmatpush1.msra.mxu0 0.0
    %1374 = vmatprep.subr.mxu0 0.0
    %1375 = vmatpush1.msra.mxu0 0.0
    %1376 = vmatprep.subr.mxu0 0.0
    %1377 = vmatpush1.msra.mxu0 0.0
    %1378 = vmatprep.subr.mxu0 0.0
    %1379 = vmatpush1.msra.mxu0 0.0
    %1380 = vmatprep.subr.mxu0 0.0
    %1381 = vmatpush1.msra.mxu0 0.0
    %1382 = vmatprep.subr.mxu0 0.0
    %1383 = vmatpush1.msra.mxu0 0.0
    %1384 = vmatprep.subr.mxu0 0.0
    %1385 = vmatpush1.msra.mxu0 0.0
    %1386 = vmatprep.subr.mxu0 0.0
    %1387 = vmatpush1.msra.mxu0 0.0
    %1388 = vmatprep.subr.mxu0 0.0
    %1389 = vmatpush1.msra.mxu0 0.0
    %1390 = vmatprep.subr.mxu0 0.0
    %1391 = vmatpush1.msra.mxu0 0.0
    %1392 = vmatprep.subr.mxu0 0.0
    %1393 = vmatpush1.msra.mxu0 0.0
    %1394 = vmatprep.subr.mxu0 0.0
    %1395 = vmatpush1.msra.mxu0 0.0
    %1396 = vmatprep.subr.mxu0 0.0
    %1397 = vmatpush1.msra.mxu0 0.0
    %1398 = vmatprep.subr.mxu0 0.0
    %1399 = vmatpush1.msra.mxu0 0.0
    %1400 = vmatprep.subr.mxu0 0.0
    %1401 = vmatpush1.msra.mxu0 0.0
    %1402 = vmatprep.subr.mxu0 0.0
    %1403 = vmatpush1.msra.mxu0 0.0
    %1404 = vmatprep.subr.mxu0 0.0
    %1405 = vmatpush1.msra.mxu0 0.0
    %1406 = vmatprep.subr.mxu0 0.0
    %1407 = vmatpush1.msra.mxu0 0.0
    %1408 = vmatprep.subr.mxu0 0.0
    %1409 = vmatpush1.msra.mxu0 0.0
    %1410 = vmatprep.subr.mxu0 0.0
    %1411 = vmatpush1.msra.mxu0 0.0
    %1412 = vmatprep.subr.mxu0 0.0
    %1413 = vmatpush1.msra.mxu0 0.0
    %1414 = vmatprep.mubr.f32.mxu0 0.0
    %1415 = vmatmul.mubr.f32.gmra.mrb[0].mxu0 %v1345
    %v1416 = vpop.f32.mrb[0].mxu0
    %v1417 = vadd.f32 0.0, %v1416
    %v1418 = vpop.f32.mrb[0].mxu0
    %1419 = vmatprep.mubr.f32.mxu0 0.0
    %1420 = vmatmul.mubr.f32.gmra.mrb[0].mxu0 %v1348
    %v1421 = vpop.f32.mrb[0].mxu0
    %v1422 = vadd.f32 0.0, %v1421
    %v1423 = vpop.f32.mrb[0].mxu0
    %1424 = vdwg.mxu0
    %v1425 = vadd.f32 %v1011, %v1417
    %v1426 = vadd.f32 %v1012, %v1422
    %1427 = vrot.lane.b32.xlu0 %v174, 104
    %v1428 = vpop.permute.xlu0 %1427
    %1429 = vrot.lane.b32.xlu0 %v174, 72
    %v1430 = vpop.permute.xlu0 %1429
    %v1431 = vsel %vm185, %v1428, 0
    %v1433 = vsel %vm185, %v1430, 0
    %1435 = vmatprep.subr.mxu0 0.0
    %1436 = vmatpush1.xpose.msra.mxu0 %v1433
    %1437 = vmatprep.subr.mxu0 0.0
    %1438 = vmatpush1.xpose.msra.mxu0 0.0
    %1439 = vmatprep.subr.mxu0 0.0
    %1440 = vmatpush1.xpose.msra.mxu0 0.0
    %1441 = vmatprep.subr.mxu0 0.0
    %1442 = vmatpush1.xpose.msra.mxu0 0.0
    %1443 = vmatprep.subr.mxu0 0.0
    %1444 = vmatpush1.xpose.msra.mxu0 0.0
    %1445 = vmatprep.subr.mxu0 0.0
    %1446 = vmatpush1.xpose.msra.mxu0 0.0
    %1447 = vmatprep.subr.mxu0 0.0
    %1448 = vmatpush1.xpose.msra.mxu0 0.0
    %1449 = vmatprep.subr.mxu0 0.0
    %1450 = vmatpush1.xpose.msra.mxu0 0.0
    %1451 = vmatprep.subr.mxu0 0.0
    %1452 = vmatpush1.xpose.msra.mxu0 0.0
    %1453 = vmatprep.subr.mxu0 0.0
    %1454 = vmatpush1.xpose.msra.mxu0 0.0
    %1455 = vmatprep.subr.mxu0 0.0
    %1456 = vmatpush1.xpose.msra.mxu0 0.0
    %1457 = vmatprep.subr.mxu0 0.0
    %1458 = vmatpush1.xpose.msra.mxu0 0.0
    %1459 = vmatprep.subr.mxu0 0.0
    %1460 = vmatpush1.xpose.msra.mxu0 0.0
    %1461 = vmatprep.subr.mxu0 0.0
    %1462 = vmatpush1.xpose.msra.mxu0 0.0
    %1463 = vmatprep.subr.mxu0 0.0
    %1464 = vmatpush1.xpose.msra.mxu0 0.0
    %1465 = vmatprep.subr.mxu0 0.0
    %1466 = vmatpush1.xpose.msra.mxu0 0.0
    %1467 = vmatprep.subr.mxu0 0.0
    %1468 = vmatpush1.xpose.msra.mxu0 0.0
    %1469 = vmatprep.subr.mxu0 0.0
    %1470 = vmatpush1.xpose.msra.mxu0 0.0
    %1471 = vmatprep.subr.mxu0 0.0
    %1472 = vmatpush1.xpose.msra.mxu0 0.0
    %1473 = vmatprep.subr.mxu0 0.0
    %1474 = vmatpush1.xpose.msra.mxu0 0.0
    %1475 = vmatprep.subr.mxu0 0.0
    %1476 = vmatpush1.xpose.msra.mxu0 0.0
    %1477 = vmatprep.subr.mxu0 0.0
    %1478 = vmatpush1.xpose.msra.mxu0 0.0
    %1479 = vmatprep.subr.mxu0 0.0
    %1480 = vmatpush1.xpose.msra.mxu0 0.0
    %1481 = vmatprep.subr.mxu0 0.0
    %1482 = vmatpush1.xpose.msra.mxu0 0.0
    %1483 = vmatprep.subr.mxu0 0.0
    %1484 = vmatpush1.xpose.msra.mxu0 0.0
    %1485 = vmatprep.subr.mxu0 0.0
    %1486 = vmatpush1.xpose.msra.mxu0 0.0
    %1487 = vmatprep.subr.mxu0 0.0
    %1488 = vmatpush1.xpose.msra.mxu0 0.0
    %1489 = vmatprep.subr.mxu0 0.0
    %1490 = vmatpush1.xpose.msra.mxu0 0.0
    %1491 = vmatprep.subr.mxu0 0.0
    %1492 = vmatpush1.xpose.msra.mxu0 0.0
    %1493 = vmatprep.subr.mxu0 0.0
    %1494 = vmatpush1.xpose.msra.mxu0 0.0
    %1495 = vmatprep.subr.mxu0 0.0
    %1496 = vmatpush1.xpose.msra.mxu0 0.0
    %1497 = vmatprep.subr.mxu0 0.0
    %1498 = vmatpush1.xpose.msra.mxu0 0.0
    %1499 = vmatprep.mubr.f32.mxu0 0.0
    %1500 = vmatmul.mubr.f32.gmra.mrb[0].mxu0 %v1431
    %v1501 = vpop.f32.mrb[0].mxu0
    %v1502 = vadd.f32 0.0, %v1501
    %v1503 = vpop.f32.mrb[0].mxu0
    %1504 = vdwg.mxu0
    %1505 = vrot.lane.b32.xlu0 %v179, 104
    %v1506 = vpop.permute.xlu0 %1505
    %1507 = vrot.lane.b32.xlu0 %v179, 72
    %v1508 = vpop.permute.xlu0 %1507
    %v1509 = vsel %vm185, %v1506, 0
    %v1511 = vsel %vm185, %v1508, 0
    %1513 = vmatprep.subr.mxu0 0.0
    %1514 = vmatpush1.xpose.msra.mxu0 %v1511
    %1515 = vmatprep.subr.mxu0 0.0
    %1516 = vmatpush1.xpose.msra.mxu0 0.0
    %1517 = vmatprep.subr.mxu0 0.0
    %1518 = vmatpush1.xpose.msra.mxu0 0.0
    %1519 = vmatprep.subr.mxu0 0.0
    %1520 = vmatpush1.xpose.msra.mxu0 0.0
    %1521 = vmatprep.subr.mxu0 0.0
    %1522 = vmatpush1.xpose.msra.mxu0 0.0
    %1523 = vmatprep.subr.mxu0 0.0
    %1524 = vmatpush1.xpose.msra.mxu0 0.0
    %1525 = vmatprep.subr.mxu0 0.0
    %1526 = vmatpush1.xpose.msra.mxu0 0.0
    %1527 = vmatprep.subr.mxu0 0.0
    %1528 = vmatpush1.xpose.msra.mxu0 0.0
    %1529 = vmatprep.subr.mxu0 0.0
    %1530 = vmatpush1.xpose.msra.mxu0 0.0
    %1531 = vmatprep.subr.mxu0 0.0
    %1532 = vmatpush1.xpose.msra.mxu0 0.0
    %1533 = vmatprep.subr.mxu0 0.0
    %1534 = vmatpush1.xpose.msra.mxu0 0.0
    %1535 = vmatprep.subr.mxu0 0.0
    %1536 = vmatpush1.xpose.msra.mxu0 0.0
    %1537 = vmatprep.subr.mxu0 0.0
    %1538 = vmatpush1.xpose.msra.mxu0 0.0
    %1539 = vmatprep.subr.mxu0 0.0
    %1540 = vmatpush1.xpose.msra.mxu0 0.0
    %1541 = vmatprep.subr.mxu0 0.0
    %1542 = vmatpush1.xpose.msra.mxu0 0.0
    %1543 = vmatprep.subr.mxu0 0.0
    %1544 = vmatpush1.xpose.msra.mxu0 0.0
    %1545 = vmatprep.subr.mxu0 0.0
    %1546 = vmatpush1.xpose.msra.mxu0 0.0
    %1547 = vmatprep.subr.mxu0 0.0
    %1548 = vmatpush1.xpose.msra.mxu0 0.0
    %1549 = vmatprep.subr.mxu0 0.0
    %1550 = vmatpush1.xpose.msra.mxu0 0.0
    %1551 = vmatprep.subr.mxu0 0.0
    %1552 = vmatpush1.xpose.msra.mxu0 0.0
    %1553 = vmatprep.subr.mxu0 0.0
    %1554 = vmatpush1.xpose.msra.mxu0 0.0
    %1555 = vmatprep.subr.mxu0 0.0
    %1556 = vmatpush1.xpose.msra.mxu0 0.0
    %1557 = vmatprep.subr.mxu0 0.0
    %1558 = vmatpush1.xpose.msra.mxu0 0.0
    %1559 = vmatprep.subr.mxu0 0.0
    %1560 = vmatpush1.xpose.msra.mxu0 0.0
    %1561 = vmatprep.subr.mxu0 0.0
    %1562 = vmatpush1.xpose.msra.mxu0 0.0
    %1563 = vmatprep.subr.mxu0 0.0
    %1564 = vmatpush1.xpose.msra.mxu0 0.0
    %1565 = vmatprep.subr.mxu0 0.0
    %1566 = vmatpush1.xpose.msra.mxu0 0.0
    %1567 = vmatprep.subr.mxu0 0.0
    %1568 = vmatpush1.xpose.msra.mxu0 0.0
    %1569 = vmatprep.subr.mxu0 0.0
    %1570 = vmatpush1.xpose.msra.mxu0 0.0
    %1571 = vmatprep.subr.mxu0 0.0
    %1572 = vmatpush1.xpose.msra.mxu0 0.0
    %1573 = vmatprep.subr.mxu0 0.0
    %1574 = vmatpush1.xpose.msra.mxu0 0.0
    %1575 = vmatprep.subr.mxu0 0.0
    %1576 = vmatpush1.xpose.msra.mxu0 0.0
    %1577 = vmatprep.mubr.f32.mxu0 0.0
    %1578 = vmatmul.mubr.f32.gmra.mrb[0].mxu0 %v1509
    %v1579 = vpop.f32.mrb[0].mxu0
    %v1580 = vadd.f32 0.0, %v1579
    %v1581 = vpop.f32.mrb[0].mxu0
    %1582 = vdwg.mxu0
    %v1583 = vsel %vm185, %v1502, -inf
    %1584 = vmax.xlane.f32.xlu0 %v1583
    %v1585 = vpop.xlane.xlu0 %1584
    %v1586 = vsel %vm185, %v1580, -inf
    %1587 = vmax.xlane.f32.xlu0 %v1586
    %v1588 = vpop.xlane.xlu0 %1587
    %v1589 = vsub.f32 %v1502, %v1585
    %v1590 = vsub.f32 %v1580, %v1588
    %v1591 = vmul.f32 %v1589, 1.442695
    %v1592 = vpow.pop %v1591
    %v1593 = vmul.f32 %v1590, 1.442695
    %v1594 = vpow.pop %v1593
    %v1595 = vsel %vm185, %v1592, 0.0
    %1596 = vadd.xlane.f32.xlu0 %v1595
    %v1597 = vpop.xlane.xlu0 %1596
    %v1598 = vsel %vm185, %v1594, 0.0
    %1599 = vadd.xlane.f32.xlu0 %v1598
    %v1600 = vpop.xlane.xlu0 %1599
    %v1601 = vrcp.pop %v1597
    %v1602 = vmul.f32 %v1592, %v1601
    %v1603 = vrcp.pop %v1600
    %v1604 = vmul.f32 %v1594, %v1603
    %1605 = vrot.lane.b32.xlu0 %v174, 40
    %v1606 = vpop.permute.xlu0 %1605
    %v1609 = vsel %vm185, %v1602, 0
    %1611 = vmatprep.subr.mxu0 0.0
    %1612 = vmatpush1.msra.mxu0 %v1606
    %1613 = vmatprep.subr.mxu0 0.0
    %1614 = vmatpush1.msra.mxu0 0.0
    %1615 = vmatprep.subr.mxu0 0.0
    %1616 = vmatpush1.msra.mxu0 0.0
    %1617 = vmatprep.subr.mxu0 0.0
    %1618 = vmatpush1.msra.mxu0 0.0
    %1619 = vmatprep.subr.mxu0 0.0
    %1620 = vmatpush1.msra.mxu0 0.0
    %1621 = vmatprep.subr.mxu0 0.0
    %1622 = vmatpush1.msra.mxu0 0.0
    %1623 = vmatprep.subr.mxu0 0.0
    %1624 = vmatpush1.msra.mxu0 0.0
    %1625 = vmatprep.subr.mxu0 0.0
    %1626 = vmatpush1.msra.mxu0 0.0
    %1627 = vmatprep.subr.mxu0 0.0
    %1628 = vmatpush1.msra.mxu0 0.0
    %1629 = vmatprep.subr.mxu0 0.0
    %1630 = vmatpush1.msra.mxu0 0.0
    %1631 = vmatprep.subr.mxu0 0.0
    %1632 = vmatpush1.msra.mxu0 0.0
    %1633 = vmatprep.subr.mxu0 0.0
    %1634 = vmatpush1.msra.mxu0 0.0
    %1635 = vmatprep.subr.mxu0 0.0
    %1636 = vmatpush1.msra.mxu0 0.0
    %1637 = vmatprep.subr.mxu0 0.0
    %1638 = vmatpush1.msra.mxu0 0.0
    %1639 = vmatprep.subr.mxu0 0.0
    %1640 = vmatpush1.msra.mxu0 0.0
    %1641 = vmatprep.subr.mxu0 0.0
    %1642 = vmatpush1.msra.mxu0 0.0
    %1643 = vmatprep.subr.mxu0 0.0
    %1644 = vmatpush1.msra.mxu0 0.0
    %1645 = vmatprep.subr.mxu0 0.0
    %1646 = vmatpush1.msra.mxu0 0.0
    %1647 = vmatprep.subr.mxu0 0.0
    %1648 = vmatpush1.msra.mxu0 0.0
    %1649 = vmatprep.subr.mxu0 0.0
    %1650 = vmatpush1.msra.mxu0 0.0
    %1651 = vmatprep.subr.mxu0 0.0
    %1652 = vmatpush1.msra.mxu0 0.0
    %1653 = vmatprep.subr.mxu0 0.0
    %1654 = vmatpush1.msra.mxu0 0.0
    %1655 = vmatprep.subr.mxu0 0.0
    %1656 = vmatpush1.msra.mxu0 0.0
    %1657 = vmatprep.subr.mxu0 0.0
    %1658 = vmatpush1.msra.mxu0 0.0
    %1659 = vmatprep.subr.mxu0 0.0
    %1660 = vmatpush1.msra.mxu0 0.0
    %1661 = vmatprep.subr.mxu0 0.0
    %1662 = vmatpush1.msra.mxu0 0.0
    %1663 = vmatprep.subr.mxu0 0.0
    %1664 = vmatpush1.msra.mxu0 0.0
    %1665 = vmatprep.subr.mxu0 0.0
    %1666 = vmatpush1.msra.mxu0 0.0
    %1667 = vmatprep.subr.mxu0 0.0
    %1668 = vmatpush1.msra.mxu0 0.0
    %1669 = vmatprep.subr.mxu0 0.0
    %1670 = vmatpush1.msra.mxu0 0.0
    %1671 = vmatprep.subr.mxu0 0.0
    %1672 = vmatpush1.msra.mxu0 0.0
    %1673 = vmatprep.subr.mxu0 0.0
    %1674 = vmatpush1.msra.mxu0 0.0
    %1675 = vmatprep.mubr.f32.mxu0 0.0
    %1676 = vmatmul.mubr.f32.gmra.mrb[0].mxu0 %v1609
    %v1677 = vpop.f32.mrb[0].mxu0
    %v1678 = vadd.f32 0.0, %v1677
    %v1679 = vpop.f32.mrb[0].mxu0
    %1680 = vdwg.mxu0
    %1681 = vrot.lane.b32.xlu0 %v179, 40
    %v1682 = vpop.permute.xlu0 %1681
    %v1685 = vsel %vm185, %v1604, 0
    %1687 = vmatprep.subr.mxu0 0.0
    %1688 = vmatpush1.msra.mxu0 %v1682
    %1689 = vmatprep.subr.mxu0 0.0
    %1690 = vmatpush1.msra.mxu0 0.0
    %1691 = vmatprep.subr.mxu0 0.0
    %1692 = vmatpush1.msra.mxu0 0.0
    %1693 = vmatprep.subr.mxu0 0.0
    %1694 = vmatpush1.msra.mxu0 0.0
    %1695 = vmatprep.subr.mxu0 0.0
    %1696 = vmatpush1.msra.mxu0 0.0
    %1697 = vmatprep.subr.mxu0 0.0
    %1698 = vmatpush1.msra.mxu0 0.0
    %1699 = vmatprep.subr.mxu0 0.0
    %1700 = vmatpush1.msra.mxu0 0.0
    %1701 = vmatprep.subr.mxu0 0.0
    %1702 = vmatpush1.msra.mxu0 0.0
    %1703 = vmatprep.subr.mxu0 0.0
    %1704 = vmatpush1.msra.mxu0 0.0
    %1705 = vmatprep.subr.mxu0 0.0
    %1706 = vmatpush1.msra.mxu0 0.0
    %1707 = vmatprep.subr.mxu0 0.0
    %1708 = vmatpush1.msra.mxu0 0.0
    %1709 = vmatprep.subr.mxu0 0.0
    %1710 = vmatpush1.msra.mxu0 0.0
    %1711 = vmatprep.subr.mxu0 0.0
    %1712 = vmatpush1.msra.mxu0 0.0
    %1713 = vmatprep.subr.mxu0 0.0
    %1714 = vmatpush1.msra.mxu0 0.0
    %1715 = vmatprep.subr.mxu0 0.0
    %1716 = vmatpush1.msra.mxu0 0.0
    %1717 = vmatprep.subr.mxu0 0.0
    %1718 = vmatpush1.msra.mxu0 0.0
    %1719 = vmatprep.subr.mxu0 0.0
    %1720 = vmatpush1.msra.mxu0 0.0
    %1721 = vmatprep.subr.mxu0 0.0
    %1722 = vmatpush1.msra.mxu0 0.0
    %1723 = vmatprep.subr.mxu0 0.0
    %1724 = vmatpush1.msra.mxu0 0.0
    %1725 = vmatprep.subr.mxu0 0.0
    %1726 = vmatpush1.msra.mxu0 0.0
    %1727 = vmatprep.subr.mxu0 0.0
    %1728 = vmatpush1.msra.mxu0 0.0
    %1729 = vmatprep.subr.mxu0 0.0
    %1730 = vmatpush1.msra.mxu0 0.0
    %1731 = vmatprep.subr.mxu0 0.0
    %1732 = vmatpush1.msra.mxu0 0.0
    %1733 = vmatprep.subr.mxu0 0.0
    %1734 = vmatpush1.msra.mxu0 0.0
    %1735 = vmatprep.subr.mxu0 0.0
    %1736 = vmatpush1.msra.mxu0 0.0
    %1737 = vmatprep.subr.mxu0 0.0
    %1738 = vmatpush1.msra.mxu0 0.0
    %1739 = vmatprep.subr.mxu0 0.0
    %1740 = vmatpush1.msra.mxu0 0.0
    %1741 = vmatprep.subr.mxu0 0.0
    %1742 = vmatpush1.msra.mxu0 0.0
    %1743 = vmatprep.subr.mxu0 0.0
    %1744 = vmatpush1.msra.mxu0 0.0
    %1745 = vmatprep.subr.mxu0 0.0
    %1746 = vmatpush1.msra.mxu0 0.0
    %1747 = vmatprep.subr.mxu0 0.0
    %1748 = vmatpush1.msra.mxu0 0.0
    %1749 = vmatprep.subr.mxu0 0.0
    %1750 = vmatpush1.msra.mxu0 0.0
    %1751 = vmatprep.mubr.f32.mxu0 0.0
    %1752 = vmatmul.mubr.f32.gmra.mrb[0].mxu0 %v1685
    %v1753 = vpop.f32.mrb[0].mxu0
    %v1754 = vadd.f32 0.0, %v1753
    %v1755 = vpop.f32.mrb[0].mxu0
    %1756 = vdwg.mxu0
    %v1757 = vld [vmem:[%s3 + $0x18] sm:$0xff]
    %v1759 = vsel %vm185, %v1678, 0
    %v1762 = vsel %vm185, %v1754, 0
    %1764 = vmatprep.subr.mxu0 0.0
    %1765 = vmatpush1.msra.mxu0 %v1757
    %1766 = vmatprep.subr.mxu0 0.0
    %1767 = vmatpush1.msra.mxu0 0.0
    %1768 = vmatprep.subr.mxu0 0.0
    %1769 = vmatpush1.msra.mxu0 0.0
    %1770 = vmatprep.subr.mxu0 0.0
    %1771 = vmatpush1.msra.mxu0 0.0
    %1772 = vmatprep.subr.mxu0 0.0
    %1773 = vmatpush1.msra.mxu0 0.0
    %1774 = vmatprep.subr.mxu0 0.0
    %1775 = vmatpush1.msra.mxu0 0.0
    %1776 = vmatprep.subr.mxu0 0.0
    %1777 = vmatpush1.msra.mxu0 0.0
    %1778 = vmatprep.subr.mxu0 0.0
    %1779 = vmatpush1.msra.mxu0 0.0
    %1780 = vmatprep.subr.mxu0 0.0
    %1781 = vmatpush1.msra.mxu0 0.0
    %1782 = vmatprep.subr.mxu0 0.0
    %1783 = vmatpush1.msra.mxu0 0.0
    %1784 = vmatprep.subr.mxu0 0.0
    %1785 = vmatpush1.msra.mxu0 0.0
    %1786 = vmatprep.subr.mxu0 0.0
    %1787 = vmatpush1.msra.mxu0 0.0
    %1788 = vmatprep.subr.mxu0 0.0
    %1789 = vmatpush1.msra.mxu0 0.0
    %1790 = vmatprep.subr.mxu0 0.0
    %1791 = vmatpush1.msra.mxu0 0.0
    %1792 = vmatprep.subr.mxu0 0.0
    %1793 = vmatpush1.msra.mxu0 0.0
    %1794 = vmatprep.subr.mxu0 0.0
    %1795 = vmatpush1.msra.mxu0 0.0
    %1796 = vmatprep.subr.mxu0 0.0
    %1797 = vmatpush1.msra.mxu0 0.0
    %1798 = vmatprep.subr.mxu0 0.0
    %1799 = vmatpush1.msra.mxu0 0.0
    %1800 = vmatprep.subr.mxu0 0.0
    %1801 = vmatpush1.msra.mxu0 0.0
    %1802 = vmatprep.subr.mxu0 0.0
    %1803 = vmatpush1.msra.mxu0 0.0
    %1804 = vmatprep.subr.mxu0 0.0
    %1805 = vmatpush1.msra.mxu0 0.0
    %1806 = vmatprep.subr.mxu0 0.0
    %1807 = vmatpush1.msra.mxu0 0.0
    %1808 = vmatprep.subr.mxu0 0.0
    %1809 = vmatpush1.msra.mxu0 0.0
    %1810 = vmatprep.subr.mxu0 0.0
    %1811 = vmatpush1.msra.mxu0 0.0
    %1812 = vmatprep.subr.mxu0 0.0
    %1813 = vmatpush1.msra.mxu0 0.0
    %1814 = vmatprep.subr.mxu0 0.0
    %1815 = vmatpush1.msra.mxu0 0.0
    %1816 = vmatprep.subr.mxu0 0.0
    %1817 = vmatpush1.msra.mxu0 0.0
    %1818 = vmatprep.subr.mxu0 0.0
    %1819 = vmatpush1.msra.mxu0 0.0
    %1820 = vmatprep.subr.mxu0 0.0
    %1821 = vmatpush1.msra.mxu0 0.0
    %1822 = vmatprep.subr.mxu0 0.0
    %1823 = vmatpush1.msra.mxu0 0.0
    %1824 = vmatprep.subr.mxu0 0.0
    %1825 = vmatpush1.msra.mxu0 0.0
    %1826 = vmatprep.subr.mxu0 0.0
    %1827 = vmatpush1.msra.mxu0 0.0
    %1828 = vmatprep.mubr.f32.mxu0 0.0
    %1829 = vmatmul.mubr.f32.gmra.mrb[0].mxu0 %v1759
    %v1830 = vpop.f32.mrb[0].mxu0
    %v1831 = vadd.f32 0.0, %v1830
    %v1832 = vpop.f32.mrb[0].mxu0
    %1833 = vmatprep.mubr.f32.mxu0 0.0
    %1834 = vmatmul.mubr.f32.gmra.mrb[0].mxu0 %v1762
    %v1835 = vpop.f32.mrb[0].mxu0
    %v1836 = vadd.f32 0.0, %v1835
    %v1837 = vpop.f32.mrb[0].mxu0
    %1838 = vdwg.mxu0
    %v1839 = vadd.f32 %v1425, %v1831
    %v1840 = vadd.f32 %v1426, %v1836
    %v1841 = vadd.f32 %v50, %v1839
    %v1842 = vadd.f32 %v51, %v1840
    %v1843 = vsel %vm53, %v1841, 0.0
    %1844 = vadd.xlane.f32.xlu0 %v1843
    %v1845 = vpop.xlane.xlu0 %1844
    %v1846 = vsel %vm53, %v1842, 0.0
    %1847 = vadd.xlane.f32.xlu0 %v1846
    %v1848 = vpop.xlane.xlu0 %1847
    %v1849 = vmul.f32 %v1845, %v60
    %v1850 = vmul.f32 %v1848, %v60
    %v1851 = vsub.f32 %v1841, %v1849
    %v1852 = vsub.f32 %v1842, %v1850
    %v1853 = vmul.f32 %v1851, %v1851
    %v1854 = vmul.f32 %v1852, %v1852
    %v1855 = vsel %vm53, %v1853, 0.0
    %1856 = vadd.xlane.f32.xlu0 %v1855
    %v1857 = vpop.xlane.xlu0 %1856
    %v1858 = vsel %vm53, %v1854, 0.0
    %1859 = vadd.xlane.f32.xlu0 %v1858
    %v1860 = vpop.xlane.xlu0 %1859
    %v1861 = vmul.f32 %v1857, %v60
    %v1862 = vmul.f32 %v1860, %v60
    %v1863 = vadd.f32 %v1861, 1e-05
    %v1864 = vadd.f32 %v1862, 1e-05
    %v1865 = vrsqrt.pop %v1863
    %v1866 = vrsqrt.pop %v1864
    %v1867 = vmul.f32 %v1851, %v1865
    %v1868 = vmul.f32 %v1852, %v1866
    %v1869 = vlaneseq
    %v1870 = vshrl.u32 %v1869, 7
    %v1871 = vsub.s32 2, %v1870
    %v1872 = vrot.slane %v52, %v1871
    %v1873 = vmul.f32 %v1867, %v1872
    %v1874 = vmul.f32 %v1868, %v1872
    %v1875 = vlaneseq
    %v1876 = vshrl.u32 %v1875, 7
    %v1877 = vsub.s32 3, %v1876
    %v1878 = vrot.slane %v52, %v1877
    %v1879 = vadd.f32 %v1873, %v1878
    %v1880 = vadd.f32 %v1874, %v1878
    %v1881 = vld [vmem:[%s4] sm:$0xff]
    %v1882 = vld [vmem:[%s4 + $0x8] sm:$0xff]
    %v1883 = vld [vmem:[%s4 + $0x10] sm:$0xff]
    %v1884 = vld [vmem:[%s4 + $0x18] sm:$0xff]
    %v1885 = vlaneseq
    %v1886 = vshrl.u32 %v1885, 7
    %v1887 = vsub.s32 7, %v1886
    %v1888 = vrot.slane %v52, %v1887
    %v1890 = vsel %vm53, %v1879, 0
    %v1893 = vsel %vm53, %v1880, 0
    %1895 = vmatprep.subr.mxu0 0.0
    %1896 = vmatpush1.msra.mxu0 %v1881
    %1897 = vmatprep.subr.mxu0 0.0
    %1898 = vmatpush1.msra.mxu0 %v1882
    %1899 = vmatprep.subr.mxu0 0.0
    %1900 = vmatpush1.msra.mxu0 %v1883
    %1901 = vmatprep.subr.mxu0 0.0
    %1902 = vmatpush1.msra.mxu0 %v1884
    %1903 = vmatprep.subr.mxu0 0.0
    %1904 = vmatpush1.msra.mxu0 0.0
    %1905 = vmatprep.subr.mxu0 0.0
    %1906 = vmatpush1.msra.mxu0 0.0
    %1907 = vmatprep.subr.mxu0 0.0
    %1908 = vmatpush1.msra.mxu0 0.0
    %1909 = vmatprep.subr.mxu0 0.0
    %1910 = vmatpush1.msra.mxu0 0.0
    %1911 = vmatprep.subr.mxu0 0.0
    %1912 = vmatpush1.msra.mxu0 0.0
    %1913 = vmatprep.subr.mxu0 0.0
    %1914 = vmatpush1.msra.mxu0 0.0
    %1915 = vmatprep.subr.mxu0 0.0
    %1916 = vmatpush1.msra.mxu0 0.0
    %1917 = vmatprep.subr.mxu0 0.0
    %1918 = vmatpush1.msra.mxu0 0.0
    %1919 = vmatprep.subr.mxu0 0.0
    %1920 = vmatpush1.msra.mxu0 0.0
    %1921 = vmatprep.subr.mxu0 0.0
    %1922 = vmatpush1.msra.mxu0 0.0
    %1923 = vmatprep.subr.mxu0 0.0
    %1924 = vmatpush1.msra.mxu0 0.0
    %1925 = vmatprep.subr.mxu0 0.0
    %1926 = vmatpush1.msra.mxu0 0.0
    %1927 = vmatprep.subr.mxu0 0.0
    %1928 = vmatpush1.msra.mxu0 0.0
    %1929 = vmatprep.subr.mxu0 0.0
    %1930 = vmatpush1.msra.mxu0 0.0
    %1931 = vmatprep.subr.mxu0 0.0
    %1932 = vmatpush1.msra.mxu0 0.0
    %1933 = vmatprep.subr.mxu0 0.0
    %1934 = vmatpush1.msra.mxu0 0.0
    %1935 = vmatprep.subr.mxu0 0.0
    %1936 = vmatpush1.msra.mxu0 0.0
    %1937 = vmatprep.subr.mxu0 0.0
    %1938 = vmatpush1.msra.mxu0 0.0
    %1939 = vmatprep.subr.mxu0 0.0
    %1940 = vmatpush1.msra.mxu0 0.0
    %1941 = vmatprep.subr.mxu0 0.0
    %1942 = vmatpush1.msra.mxu0 0.0
    %1943 = vmatprep.subr.mxu0 0.0
    %1944 = vmatpush1.msra.mxu0 0.0
    %1945 = vmatprep.subr.mxu0 0.0
    %1946 = vmatpush1.msra.mxu0 0.0
    %1947 = vmatprep.subr.mxu0 0.0
    %1948 = vmatpush1.msra.mxu0 0.0
    %1949 = vmatprep.subr.mxu0 0.0
    %1950 = vmatpush1.msra.mxu0 0.0
    %1951 = vmatprep.subr.mxu0 0.0
    %1952 = vmatpush1.msra.mxu0 0.0
    %1953 = vmatprep.subr.mxu0 0.0
    %1954 = vmatpush1.msra.mxu0 0.0
    %1955 = vmatprep.subr.mxu0 0.0
    %1956 = vmatpush1.msra.mxu0 0.0
    %1957 = vmatprep.subr.mxu0 0.0
    %1958 = vmatpush1.msra.mxu0 0.0
    %1959 = vmatprep.mubr.f32.mxu0 0.0
    %1960 = vmatmul.mubr.f32.gmra.mrb[0].mxu0 %v1890
    %v1961 = vpop.f32.mrb[0].mxu0
    %v1962 = vadd.f32 %v1888, %v1961
    %v1963 = vpop.f32.mrb[0].mxu0
    %1964 = vmatprep.mubr.f32.mxu0 0.0
    %1965 = vmatmul.mubr.f32.gmra.mrb[0].mxu0 %v1893
    %v1966 = vpop.f32.mrb[0].mxu0
    %v1967 = vadd.f32 %v1888, %v1966
    %v1968 = vpop.f32.mrb[0].mxu0
    %1969 = vdwg.mxu0
    %v1970 = vmul.f32 %v1962, 0.5
    %v1971 = vmul.f32 %v1967, 0.5
    %v1972 = vmul.f32 %v1962, 0.70710677
    %v1973 = vmul.f32 %v1967, 0.70710677
    %v1974 = verf.f32.pop %v1972
    %v1975 = verf.f32.pop %v1973
    %v1976 = vadd.f32 %v1974, 1.0
    %v1977 = vadd.f32 %v1975, 1.0
    %v1978 = vmul.f32 %v1970, %v1976
    %v1979 = vmul.f32 %v1971, %v1977
    %v1980 = vld [vmem:[%s5] sm:$0xff]
    %v1981 = vld [vmem:[%s5 + $0x8] sm:$0xff]
    %v1982 = vld [vmem:[%s5 + $0x10] sm:$0xff]
    %v1983 = vld [vmem:[%s5 + $0x18] sm:$0xff]
    %v1984 = vld [vmem:[%s5 + $0x20] sm:$0xff]
    %v1985 = vld [vmem:[%s5 + $0x28] sm:$0xff]
    %v1986 = vld [vmem:[%s5 + $0x30] sm:$0xff]
    %v1987 = vld [vmem:[%s5 + $0x38] sm:$0xff]
    %v1988 = vlaneseq
    %v1989 = vshrl.u32 %v1988, 7
    %v1990 = vsub.s32 5, %v1989
    %v1991 = vrot.slane %v52, %v1990
    %vm1992 = vcmask 523264
    %v1994 = vsel %vm1992, %v1978, 0
    %v1997 = vsel %vm1992, %v1979, 0
    %1999 = vmatprep.subr.mxu0 0.0
    %2000 = vmatpush1.msra.mxu0 %v1980
    %2001 = vmatprep.subr.mxu0 0.0
    %2002 = vmatpush1.msra.mxu0 %v1981
    %2003 = vmatprep.subr.mxu0 0.0
    %2004 = vmatpush1.msra.mxu0 %v1982
    %2005 = vmatprep.subr.mxu0 0.0
    %2006 = vmatpush1.msra.mxu0 %v1983
    %2007 = vmatprep.subr.mxu0 0.0
    %2008 = vmatpush1.msra.mxu0 %v1984
    %2009 = vmatprep.subr.mxu0 0.0
    %2010 = vmatpush1.msra.mxu0 %v1985
    %2011 = vmatprep.subr.mxu0 0.0
    %2012 = vmatpush1.msra.mxu0 %v1986
    %2013 = vmatprep.subr.mxu0 0.0
    %2014 = vmatpush1.msra.mxu0 %v1987
    %2015 = vmatprep.subr.mxu0 0.0
    %2016 = vmatpush1.msra.mxu0 0.0
    %2017 = vmatprep.subr.mxu0 0.0
    %2018 = vmatpush1.msra.mxu0 0.0
    %2019 = vmatprep.subr.mxu0 0.0
    %2020 = vmatpush1.msra.mxu0 0.0
    %2021 = vmatprep.subr.mxu0 0.0
    %2022 = vmatpush1.msra.mxu0 0.0
    %2023 = vmatprep.subr.mxu0 0.0
    %2024 = vmatpush1.msra.mxu0 0.0
    %2025 = vmatprep.subr.mxu0 0.0
    %2026 = vmatpush1.msra.mxu0 0.0
    %2027 = vmatprep.subr.mxu0 0.0
    %2028 = vmatpush1.msra.mxu0 0.0
    %2029 = vmatprep.subr.mxu0 0.0
    %2030 = vmatpush1.msra.mxu0 0.0
    %2031 = vmatprep.subr.mxu0 0.0
    %2032 = vmatpush1.msra.mxu0 0.0
    %2033 = vmatprep.subr.mxu0 0.0
    %2034 = vmatpush1.msra.mxu0 0.0
    %2035 = vmatprep.subr.mxu0 0.0
    %2036 = vmatpush1.msra.mxu0 0.0
    %2037 = vmatprep.subr.mxu0 0.0
    %2038 = vmatpush1.msra.mxu0 0.0
    %2039 = vmatprep.subr.mxu0 0.0
    %2040 = vmatpush1.msra.mxu0 0.0
    %2041 = vmatprep.subr.mxu0 0.0
    %2042 = vmatpush1.msra.mxu0 0.0
    %2043 = vmatprep.subr.mxu0 0.0
    %2044 = vmatpush1.msra.mxu0 0.0
    %2045 = vmatprep.subr.mxu0 0.0
    %2046 = vmatpush1.msra.mxu0 0.0
    %2047 = vmatprep.subr.mxu0 0.0
    %2048 = vmatpush1.msra.mxu0 0.0
    %2049 = vmatprep.subr.mxu0 0.0
    %2050 = vmatpush1.msra.mxu0 0.0
    %2051 = vmatprep.subr.mxu0 0.0
    %2052 = vmatpush1.msra.mxu0 0.0
    %2053 = vmatprep.subr.mxu0 0.0
    %2054 = vmatpush1.msra.mxu0 0.0
    %2055 = vmatprep.subr.mxu0 0.0
    %2056 = vmatpush1.msra.mxu0 0.0
    %2057 = vmatprep.subr.mxu0 0.0
    %2058 = vmatpush1.msra.mxu0 0.0
    %2059 = vmatprep.subr.mxu0 0.0
    %2060 = vmatpush1.msra.mxu0 0.0
    %2061 = vmatprep.subr.mxu0 0.0
    %2062 = vmatpush1.msra.mxu0 0.0
    %2063 = vmatprep.mubr.f32.mxu0 0.0
    %2064 = vmatmul.mubr.f32.gmra.mrb[0].mxu0 %v1994
    %v2065 = vpop.f32.mrb[0].mxu0
    %v2066 = vadd.f32 %v1991, %v2065
    %v2067 = vpop.f32.mrb[0].mxu0
    %2068 = vmatprep.mubr.f32.mxu0 0.0
    %2069 = vmatmul.mubr.f32.gmra.mrb[0].mxu0 %v1997
    %v2070 = vpop.f32.mrb[0].mxu0
    %v2071 = vadd.f32 %v1991, %v2070
    %v2072 = vpop.f32.mrb[0].mxu0
    %2073 = vdwg.mxu0
    %v2074 = vadd.f32 %v1841, %v2066
    %v2075 = vadd.f32 %v1842, %v2071
    %2076 = vst.msk [vmem:[#allocation7] sm:$0xff] %vm53, %v2074
    %2077 = vst.msk [vmem:[#allocation7 + $0x8] sm:$0xff] %vm53, %v2075
    // Predicated region
    $region34: #{tpu_custom_call.1} parent=1 // pred_check
      _
    $region35: #{tpu_custom_call.1} parent=1 // pred_check_branch
      %2079 = sbr.rel (0) target = $region37
    $region36: #{tpu_custom_call.1} parent=1 // pred_region
      %s2081 = ssub.s32 256, 256
      %2082 = vsyncadd [#allocation4], %s2081
      %s2083 = sshll.u32 [#allocation7], 4
      %s2084 = int_to_ptr.vmem [resolvable:$true] %s2083
      %2089 = dma.vmem_to_hbm [thread:$0]  %s2084, 256, %s6, [#allocation4], 128, 128, 8
    $region37: #{tpu_custom_call.1} parent=1 // pred_fallthru
      _
    // Predicated region
    $region38: #{tpu_custom_call.1} parent=1 // pred_check
      _
    $region39: #{tpu_custom_call.1} parent=1 // pred_check_branch
      %2091 = sbr.rel (0) target = $region41
    $region40: #{tpu_custom_call.1} parent=1 // pred_region
      %2092 = dma.done [#allocation4], 256
    $region41: #{tpu_custom_call.1} parent=1 // pred_fallthru
      _
    %2093 = vsyncpa [#allocation3], 1
    %2094 = vsyncpa [#allocation6], 1
    %2095 = vsyncpa [#allocation4], 1

</llo_original>
